<compile_context>
chip_gen: v5e
topology: v5e:2x2
jax: 0.10.0
libtpu: 0.0.40
codegen_flags: <defaults>
</compile_context>

<pallas_src>
import functools

import jax
import jax.numpy as jnp
import numpy as np
from jax.experimental import pallas as pl
from jax.experimental.pallas import tpu as pltpu


# ----------------------------------------------------------------------------
# Shared helper: batched im2col slab (tap order dh, dw, channel).
# ----------------------------------------------------------------------------
def _im2col_slab(arr, KH, KW, H, W):
    """arr: (..., Hp, Wp, C) -> (prod(lead)*H*W, KH*KW*C) slab (dtype preserved)."""
    C = arr.shape[-1]
    cols = []
    for dh in range(KH):
        for dw in range(KW):
            cols.append(arr[..., dh:dh + H, dw:dw + W, :].reshape(-1, C))
    return jnp.concatenate(cols, axis=-1)


# ----------------------------------------------------------------------------
# Phase 1: input projection  Xproj = conv_x(x) + bias   (parallel over T)
# ----------------------------------------------------------------------------
def input_proj_kernel(x_ref, wx_ref, b_ref, xproj_ref, *, KH, KW):
    _, B, Hp, Wp, Cin = x_ref.shape
    H = Hp - (KH - 1)
    W = Wp - (KW - 1)

    x = x_ref[0]                                        # (B, Hp, Wp, Cin) bf16
    slab = _im2col_slab(x, KH, KW, H, W)                # (B*H*W, KH*KW*Cin) bf16
    acc = jnp.dot(slab, wx_ref[...],                    # bf16 x bf16 -> f32
                  preferred_element_type=jnp.float32)
    xproj_ref[0] = (acc + b_ref[...]).astype(xproj_ref.dtype)   # bias folded in


def _input_proj_pallas(x_seq, wx_flat_bf16, bias, KH, KW, hidden_dim):
    """x_seq: (T, B, H, W, Cin) f32 -> Xproj (T, B*H*W, 4*hidden_dim) bf16."""
    T, B, H, W, Cin = x_seq.shape
    ph, pw = KH // 2, KW // 2
    Hp, Wp = H + 2 * ph, W + 2 * pw
    C4 = 4 * hidden_dim
    BHW = B * H * W
    K = KH * KW * Cin

    # spatial zero pad once ('same' padding); bf16 halves the DMA + no in-kernel casts
    x_pad = jnp.pad(x_seq, ((0, 0), (0, 0), (ph, ph), (pw, pw), (0, 0))
                    ).astype(jnp.bfloat16)
    b2 = bias.reshape(1, C4).astype(jnp.float32)

    cost = pl.CostEstimate(
        flops=2 * T * BHW * K * C4,
        transcendentals=0,
        bytes_accessed=int(x_pad.size) * 2 + int(wx_flat_bf16.size) * 2
                       + int(b2.size) * 4 + T * BHW * C4 * 2)

    grid_spec = pltpu.PrefetchScalarGridSpec(
        num_scalar_prefetch=0,
        grid=(T,),                                  # whole batch per grid step
        in_specs=[
            pl.BlockSpec((1, B, Hp, Wp, Cin), lambda t: (t, 0, 0, 0, 0)),
            pl.BlockSpec((K, C4), lambda t: (0, 0)),
            pl.BlockSpec((1, C4), lambda t: (0, 0)),
        ],
        out_specs=pl.BlockSpec((1, BHW, C4), lambda t: (t, 0, 0)),
    )
    return pl.pallas_call(
        functools.partial(input_proj_kernel, KH=KH, KW=KW),
        out_shape=jax.ShapeDtypeStruct((T, BHW, C4), jnp.bfloat16),
        grid_spec=grid_spec,
        compiler_params=pltpu.CompilerParams(
            dimension_semantics=("parallel",)),
        cost_estimate=cost,
    )(x_pad, wx_flat_bf16, b2)


# ----------------------------------------------------------------------------
# Phase 2: recurrence over T with the fused (batch-folded) hidden-state matmul.
# ----------------------------------------------------------------------------
def convlstm_recurrent_kernel(xproj_ref, wh_ref,          # inputs
                              out_ref, c_last_ref,        # outputs
                              hpad_ref, c_ref,            # scratch
                              *, KH, KW, B, H, W):
    Chid = hpad_ref.shape[-1]
    ph, pw = KH // 2, KW // 2
    t = pl.program_id(0)

    # h0 = c0 = 0 (ConvLSTMCell.init_hidden); zero halo of hpad set once and
    # never overwritten (interior-only store below).
    @pl.when(t == 0)
    def _():
        hpad_ref[...] = jnp.zeros_like(hpad_ref)
        c_ref[...] = jnp.zeros_like(c_ref)

    # Fused hidden conv: one (B*H*W, KH*KW*Chid) @ (KH*KW*Chid, 4*Chid) matmul,
    # seeded by the precomputed input projection (bias already included).
    hs = _im2col_slab(hpad_ref[...], KH, KW, H, W)        # bf16, no per-tap cast
    acc = xproj_ref[0].astype(jnp.float32) + jnp.dot(
        hs, wh_ref[...], preferred_element_type=jnp.float32)

    # Two full-width (128-lane) EUP passes instead of four masked 32-lane ones.
    # Gate order of torch.split: i, f, o, g.  Elementwise math stays f32 (v5e).
    # TODO(synk): on v6e/v7x the gate/elementwise math could run in bf16.
    sig = jax.nn.sigmoid(acc)
    th = jnp.tanh(acc)
    i = sig[:, 0 * Chid:1 * Chid]
    f = sig[:, 1 * Chid:2 * Chid]
    o = sig[:, 2 * Chid:3 * Chid]
    g = th[:, 3 * Chid:4 * Chid]

    c_next = f * c_ref[...] + i * g
    h_next = o * jnp.tanh(c_next)
    c_ref[...] = c_next

    # Update only the interior of the padded bf16 h buffer (zero halo preserved).
    hpad_ref[:, ph:ph + H, pw:pw + W, :] = (
        h_next.astype(hpad_ref.dtype).reshape(B, H, W, Chid))

    out_ref[0] = h_next                                   # (B*H*W, Chid)
    # TODO(synk): lane-dense (B*H, W*Chid) output slab skipped — the required
    #             lane-merging reshape of h_next is a lowering risk.

    @pl.when(t == pl.num_programs(0) - 1)                 # final cell state only
    def _():
        c_last_ref[...] = c_next


def _recurrent_pallas(xproj, wh_flat_bf16, KH, KW, hidden_dim, B, H, W):
    """xproj: (T, B*H*W, 4*hid) bf16 -> (out (T,B*H*W,hid) f32, c_last (B*H*W,hid) f32)."""
    T, BHW, C4 = xproj.shape
    ph, pw = KH // 2, KW // 2
    Hp, Wp = H + 2 * ph, W + 2 * pw
    K2 = KH * KW * hidden_dim

    cost = pl.CostEstimate(
        flops=2 * T * BHW * K2 * C4 + 10 * T * BHW * hidden_dim,
        transcendentals=T * BHW * (2 * C4 + hidden_dim),
        bytes_accessed=int(xproj.size) * 2 + int(wh_flat_bf16.size) * 2
                       + T * BHW * hidden_dim * 4 + BHW * hidden_dim * 4)

    # VMEM footprint at this config is far below every generation's limit
    # (v7x scoped default 32 MiB); no explicit vmem_limit_bytes needed.
    grid_spec = pltpu.PrefetchScalarGridSpec(
        num_scalar_prefetch=0,
        grid=(T,),                                  # serial recurrence only
        in_specs=[
            pl.BlockSpec((1, BHW, C4), lambda t: (t, 0, 0)),
            pl.BlockSpec((K2, C4), lambda t: (0, 0)),
        ],
        out_specs=(
            pl.BlockSpec((1, BHW, hidden_dim), lambda t: (t, 0, 0)),
            pl.BlockSpec((BHW, hidden_dim), lambda t: (0, 0)),
        ),
        scratch_shapes=[
            pltpu.VMEM((B, Hp, Wp, hidden_dim), jnp.bfloat16),  # zero-padded h
            pltpu.VMEM((BHW, hidden_dim), jnp.float32),         # c state (f32)
        ],
    )
    out_seq, c_last = pl.pallas_call(
        functools.partial(convlstm_recurrent_kernel,
                          KH=KH, KW=KW, B=B, H=H, W=W),
        out_shape=(
            jax.ShapeDtypeStruct((T, BHW, hidden_dim), jnp.float32),
            jax.ShapeDtypeStruct((BHW, hidden_dim), jnp.float32),
        ),
        grid_spec=grid_spec,
        compiler_params=pltpu.CompilerParams(
            dimension_semantics=("arbitrary",)),
        cost_estimate=cost,
    )(xproj, wh_flat_bf16)
    return out_seq, c_last


# ----------------------------------------------------------------------------
# One ConvLSTM layer (both phases) + stacked forward.
# ----------------------------------------------------------------------------
def convlstm_layer_pallas(x_seq, wx, wh, bias, hidden_dim):
    """x_seq: (T, B, H, W, Cin) f32.  Returns (out_seq, h_last, c_last)."""
    T, B, H, W, Cin = x_seq.shape
    KH, KW = int(wx.shape[0]), int(wx.shape[1])
    C4 = 4 * hidden_dim

    # Flatten weights to im2col form (tap order dh, dw, c); MXU operands bf16.
    wx_flat = wx.reshape(KH * KW * Cin, C4).astype(jnp.bfloat16)
    wh_flat = wh.reshape(KH * KW * hidden_dim, C4).astype(jnp.bfloat16)

    xproj = _input_proj_pallas(x_seq, wx_flat, bias, KH, KW, hidden_dim)
    out_flat, c_flat = _recurrent_pallas(xproj, wh_flat, KH, KW, hidden_dim, B, H, W)

    out_seq = out_flat.reshape(T, B, H, W, hidden_dim)
    h_last = out_seq[-1]                          # identical to last h
    c_last = c_flat.reshape(B, H, W, hidden_dim)
    return out_seq, h_last, c_last


def convlstm_forward_pallas(x_seq, params, hidden_dims, return_all_layers=False):
    """x_seq: (T, B, H, W, Cin). params: list of (wx, wh, bias) per layer."""
    cur = x_seq
    layer_output_list, last_state_list = [], []
    for (wx, wh, b_), hid in zip(params, hidden_dims):
        out_seq, h_last, c_last = convlstm_layer_pallas(cur, wx, wh, b_, hid)
        cur = out_seq
        layer_output_list.append(out_seq)
        last_state_list.append((h_last, c_last))
    if not return_all_layers:
        layer_output_list = layer_output_list[-1:]
        last_state_list = last_state_list[-1:]
    return layer_output_list, last_state_list


# ----------------------------------------------------------------------------
# Pure-JAX reference (mirrors the PyTorch module) for a sanity check.
# ----------------------------------------------------------------------------
def convlstm_forward_ref(x_seq, params, hidden_dims):
    T, B, H, W, _ = x_seq.shape
    cur = x_seq
    for (wx, wh, b_), hid in zip(params, hidden_dims):
        w_full = jnp.concatenate([wx, wh], axis=2)  # (KH,KW,Cin+hid,4hid)
        h = jnp.zeros((B, H, W, hid), jnp.float32)
        c = jnp.zeros((B, H, W, hid), jnp.float32)
        outs = []
        for t in range(T):
            comb = jnp.concatenate([cur[t], h], axis=-1)
            cc = jax.lax.conv_general_dilated(
                comb, w_full, (1, 1), 'SAME',
                dimension_numbers=('NHWC', 'HWIO', 'NHWC')) + b_
            i = jax.nn.sigmoid(cc[..., 0 * hid:1 * hid])
            f = jax.nn.sigmoid(cc[..., 1 * hid:2 * hid])
            o = jax.nn.sigmoid(cc[..., 2 * hid:3 * hid])
            g = jnp.tanh(cc[..., 3 * hid:4 * hid])
            c = f * c + i * g
            h = o * jnp.tanh(c)
            outs.append(h)
        cur = jnp.stack(outs, axis=0)
        last = (h, c)
    return cur, last[0], last[1]


if __name__ == "__main__":
    # Config consistent with ConvLSTM(input_dim=4, hidden_dim=32,
    # kernel_size=(3,3), num_layers=2, batch_first=True, bias=True).
    B, T, Cin, H, W = 2, 8, 4, 16, 16
    hidden_dims = [32, 32]
    KH = KW = 3
    num_layers = 2

    key = jax.random.PRNGKey(0)
    key, k_x = jax.random.split(key)
    # PyTorch-style input: (B, T, C, H, W) since batch_first=True
    x_btchw = jax.random.normal(k_x, (B, T, Cin, H, W), jnp.float32)

    # Deterministic parameter init (PyTorch Conv2d default: U(-1/sqrt(fan_in), +)).
    params = []
    cur_in = Cin
    for l in range(num_layers):
        hid = hidden_dims[l]
        fan_in = (cur_in + hid) * KH * KW
        bound = 1.0 / (fan_in ** 0.5)
        key, kw_, kb_ = jax.random.split(key, 3)
        # torch weight layout: (4*hid, cur_in+hid, KH, KW)
        w_oihw = jax.random.uniform(kw_, (4 * hid, cur_in + hid, KH, KW),
                                    jnp.float32, -bound, bound)
        b_ = jax.random.uniform(kb_, (4 * hid,), jnp.float32, -bound, bound)
        w_hwio = jnp.transpose(w_oihw, (2, 3, 1, 0))   # (KH, KW, Cin+hid, 4*hid)
        wx = w_hwio[:, :, :cur_in, :]                  # input-channel part
        wh = w_hwio[:, :, cur_in:, :]                  # hidden-channel part
        params.append((wx, wh, b_))
        cur_in = hid

    # to kernel layout (T, B, H, W, C)
    x_seq = jnp.transpose(x_btchw, (1, 0, 3, 4, 2))

    layer_outputs, last_states = convlstm_forward_pallas(
        x_seq, params, hidden_dims, return_all_layers=False)

    # Back to PyTorch conventions: layer_output (B, T, hid, H, W), states (B, hid, H, W)
    layer_output_btchw = jnp.transpose(layer_outputs[-1], (1, 0, 4, 2, 3))
    h_bchw = jnp.transpose(last_states[-1][0], (0, 3, 1, 2))
    c_bchw = jnp.transpose(last_states[-1][1], (0, 3, 1, 2))
    jax.block_until_ready((layer_output_btchw, h_bchw, c_bchw))

    # Sanity check against a pure-JAX f32 reference of the same math
    # (tolerance covers bf16 MXU operands + the bf16 inter-phase Xproj).
    ref_out, ref_h, ref_c = convlstm_forward_ref(x_seq, params, hidden_dims)
    np.testing.assert_allclose(np.asarray(layer_outputs[-1]), np.asarray(ref_out),
                               atol=6e-2, rtol=6e-2)
    np.testing.assert_allclose(np.asarray(last_states[-1][0]), np.asarray(ref_h),
                               atol=6e-2, rtol=6e-2)
    np.testing.assert_allclose(np.asarray(last_states[-1][1]), np.asarray(ref_c),
                               atol=6e-2, rtol=6e-2)

    print("KERNEL_OK")
</pallas_src>

<mosaic_0001>
module attributes {stable_mosaic.version = 11 : i64} {
  func.func @input_proj_kernel(%arg0: i32, %arg1: memref<1x2x18x18x4xbf16, #tpu.memory_space<vmem>>, %arg2: memref<36x128xbf16, #tpu.memory_space<vmem>>, %arg3: memref<1x128xf32, #tpu.memory_space<vmem>>, %arg4: memref<1x512x128xbf16, #tpu.memory_space<vmem>>) attributes {dimension_semantics = [#tpu.dimension_semantics<parallel>], iteration_bounds = array<i64: 8>, scalar_prefetch = 0 : i64, scratch_operands = 0 : i64, tpu.core_type = #tpu.core_type<tc>, window_params = [{transform_indices = @transform_0, window_bounds = array<i64: 1, 2, 18, 18, 4>}, {pipeline_mode = #tpu.pipeline_mode<synchronous>, transform_indices = @transform_1, window_bounds = array<i64: 36, 128>}, {pipeline_mode = #tpu.pipeline_mode<synchronous>, transform_indices = @transform_2, window_bounds = array<i64: 1, 128>}, {transform_indices = @transform_3, window_bounds = array<i64: 1, 512, 128>}]} {
    %c0 = arith.constant 0 : index
    %c0_0 = arith.constant 0 : index
    %c0_1 = arith.constant 0 : index
    %c0_2 = arith.constant 0 : index
    %c0_3 = arith.constant 0 : index
    %0 = vector.load %arg1[%c0, %c0_0, %c0_1, %c0_2, %c0_3] : memref<1x2x18x18x4xbf16, #tpu.memory_space<vmem>>, vector<1x2x18x18x4xbf16>
    %1 = vector.shape_cast %0 : vector<1x2x18x18x4xbf16> to vector<2x18x18x4xbf16>
    %2 = vector.extract_strided_slice %1 {offsets = [0, 0, 0, 0], sizes = [2, 16, 16, 4], strides = [1, 1, 1, 1]} : vector<2x18x18x4xbf16> to vector<2x16x16x4xbf16>
    %3 = vector.shape_cast %2 : vector<2x16x16x4xbf16> to vector<512x4xbf16>
    %4 = vector.extract_strided_slice %1 {offsets = [0, 0, 1, 0], sizes = [2, 16, 16, 4], strides = [1, 1, 1, 1]} : vector<2x18x18x4xbf16> to vector<2x16x16x4xbf16>
    %5 = vector.shape_cast %4 : vector<2x16x16x4xbf16> to vector<512x4xbf16>
    %6 = vector.extract_strided_slice %1 {offsets = [0, 0, 2, 0], sizes = [2, 16, 16, 4], strides = [1, 1, 1, 1]} : vector<2x18x18x4xbf16> to vector<2x16x16x4xbf16>
    %7 = vector.shape_cast %6 : vector<2x16x16x4xbf16> to vector<512x4xbf16>
    %8 = vector.extract_strided_slice %1 {offsets = [0, 1, 0, 0], sizes = [2, 16, 16, 4], strides = [1, 1, 1, 1]} : vector<2x18x18x4xbf16> to vector<2x16x16x4xbf16>
    %9 = vector.shape_cast %8 : vector<2x16x16x4xbf16> to vector<512x4xbf16>
    %10 = vector.extract_strided_slice %1 {offsets = [0, 1, 1, 0], sizes = [2, 16, 16, 4], strides = [1, 1, 1, 1]} : vector<2x18x18x4xbf16> to vector<2x16x16x4xbf16>
    %11 = vector.shape_cast %10 : vector<2x16x16x4xbf16> to vector<512x4xbf16>
    %12 = vector.extract_strided_slice %1 {offsets = [0, 1, 2, 0], sizes = [2, 16, 16, 4], strides = [1, 1, 1, 1]} : vector<2x18x18x4xbf16> to vector<2x16x16x4xbf16>
    %13 = vector.shape_cast %12 : vector<2x16x16x4xbf16> to vector<512x4xbf16>
    %14 = vector.extract_strided_slice %1 {offsets = [0, 2, 0, 0], sizes = [2, 16, 16, 4], strides = [1, 1, 1, 1]} : vector<2x18x18x4xbf16> to vector<2x16x16x4xbf16>
    %15 = vector.shape_cast %14 : vector<2x16x16x4xbf16> to vector<512x4xbf16>
    %16 = vector.extract_strided_slice %1 {offsets = [0, 2, 1, 0], sizes = [2, 16, 16, 4], strides = [1, 1, 1, 1]} : vector<2x18x18x4xbf16> to vector<2x16x16x4xbf16>
    %17 = vector.shape_cast %16 : vector<2x16x16x4xbf16> to vector<512x4xbf16>
    %18 = vector.extract_strided_slice %1 {offsets = [0, 2, 2, 0], sizes = [2, 16, 16, 4], strides = [1, 1, 1, 1]} : vector<2x18x18x4xbf16> to vector<2x16x16x4xbf16>
    %19 = vector.shape_cast %18 : vector<2x16x16x4xbf16> to vector<512x4xbf16>
    %20 = tpu.concatenate %3, %5, %7, %9, %11, %13, %15, %17, %19 in 1 : vector<512x4xbf16>, vector<512x4xbf16>, vector<512x4xbf16>, vector<512x4xbf16>, vector<512x4xbf16>, vector<512x4xbf16>, vector<512x4xbf16>, vector<512x4xbf16>, vector<512x4xbf16> -> vector<512x36xbf16>
    %c0_4 = arith.constant 0 : index
    %c0_5 = arith.constant 0 : index
    %21 = vector.load %arg2[%c0_4, %c0_5] : memref<36x128xbf16, #tpu.memory_space<vmem>>, vector<36x128xbf16>
    %cst = arith.constant dense<0.000000e+00> : vector<512x128xf32>
    %22 = tpu.matmul %20, %21, %cst {dimension_numbers = #tpu.dot_dimension_numbers<[1], [0], [0], [1], [0, 0, 1, 1], [], []>} : vector<512x36xbf16>, vector<36x128xbf16>, vector<512x128xf32> -> vector<512x128xf32>
    %c0_6 = arith.constant 0 : index
    %c0_7 = arith.constant 0 : index
    %23 = vector.load %arg3[%c0_6, %c0_7] : memref<1x128xf32, #tpu.memory_space<vmem>>, vector<1x128xf32>
    %24 = vector.broadcast %23 : vector<1x128xf32> to vector<512x128xf32>
    %25 = arith.addf %22, %24 : vector<512x128xf32>
    %26 = arith.truncf %25 : vector<512x128xf32> to vector<512x128xbf16>
    %c0_8 = arith.constant 0 : index
    %c0_9 = arith.constant 0 : index
    %c0_10 = arith.constant 0 : index
    %27 = vector.load %arg4[%c0_8, %c0_9, %c0_10] : memref<1x512x128xbf16, #tpu.memory_space<vmem>>, vector<1x512x128xbf16>
    %28 = vector.shape_cast %27 : vector<1x512x128xbf16> to vector<512x128xbf16>
    %29 = vector.shape_cast %26 : vector<512x128xbf16> to vector<1x512x128xbf16>
    tpu.vector_store %arg4[%c0_8, %c0_9, %c0_10], %29 {strides = array<i32>} : memref<1x512x128xbf16, #tpu.memory_space<vmem>>, vector<1x512x128xbf16>,
    return
  }
  func.func @transform_0(%arg0: i32) -> (i32, i32, i32, i32, i32) {
    %c0_i32 = arith.constant 0 : i32
    %c0_i32_0 = arith.constant 0 : i32
    %c0_i32_1 = arith.constant 0 : i32
    %c0_i32_2 = arith.constant 0 : i32
    %c0_i32_3 = arith.constant 0 : i32
    return %arg0, %c0_i32, %c0_i32_0, %c0_i32_1, %c0_i32_2 : i32, i32, i32, i32, i32
  }
  func.func @transform_1(%arg0: i32) -> (i32, i32) {
    %c0_i32 = arith.constant 0 : i32
    %c0_i32_0 = arith.constant 0 : i32
    %c0_i32_1 = arith.constant 0 : i32
    return %c0_i32, %c0_i32_0 : i32, i32
  }
  func.func @transform_2(%arg0: i32) -> (i32, i32) {
    %c0_i32 = arith.constant 0 : i32
    %c0_i32_0 = arith.constant 0 : i32
    %c0_i32_1 = arith.constant 0 : i32
    return %c0_i32, %c0_i32_0 : i32, i32
  }
  func.func @transform_3(%arg0: i32) -> (i32, i32, i32) {
    %c0_i32 = arith.constant 0 : i32
    %c0_i32_0 = arith.constant 0 : i32
    %c0_i32_1 = arith.constant 0 : i32
    return %arg0, %c0_i32, %c0_i32_0 : i32, i32, i32
  }
}

</mosaic_0001>

<llo_original>
// kernel: tpu_custom_call.1
$region0: #{tpu_custom_call.1}
  #allocation0 [shape = 'u32[]', space=smem, size = 0x4, offset = 0x4, fixed_abs, tag = 'smem constant byte address 0x4 - core index']
  #allocation1 [shape = 'u32[72,128]{1,0:T(1,128)}', space=vmem, size = 0x9000, scoped, tag = 'internal scratch']
  %s0 = inlined_call_operand.vmem [shape: bf16[8,2,18,18,4], index: 0, kind: input, shape index: {}]
  %s1 = inlined_call_operand.vmem [shape: bf16[36,128], index: 1, kind: input, shape index: {}]
  %s2 = inlined_call_operand.vmem [shape: f32[1,128], index: 2, kind: input, shape index: {}]
  %s3 = inlined_call_operand.hbm [shape: bf16[8,512,128], index: 3, kind: output, shape index: {}]
  %s4 = sld [smem:[#allocation0]]
  $region45: #{tpu_custom_call.1} parent=0
    _
  %s6 = ssub.s32 1, %s4
  %s7 = scalar_select 0, %s6, %s4
  $region1: #{tpu_custom_call.1} parent=0
    #allocation2 [shape = 'u8[262144]{0}', space=vmem, size = 0x40000, scoped, tag = 'output window, operand 0']
    #allocation3 [shape = 's32[2]{0}', space=sflag, size = 0x8, scoped, tag = 'scoped memory for tpu_custom_call.1']
    %8 = vsyncpa [#allocation3], 0
    %s9 = scalar_lea.sflag [#allocation3], 1
    %10 = vsyncpa %s9, 0
    loop: start=0, step=1, limit=10
    $region2: #{tpu_custom_call.1} parent=1 // loop_pre_header
      _
    $region3: #{tpu_custom_call.1} parent=1 // loop_header
      %s12 = sphi 0, %s16
      %p13 = scmp.ge.s32.totalorder %s12, 10
      %s22 = sphi 0, %s24
      %s25 = sphi 0, %s22
      %s26 = sphi 0, %s25
      %s42 = sphi 0, %s26
      %s46 = sphi 0, %s46
      %s48 = sphi 0, %s46
      %s49 = sphi 0, %s48
      %s63 = sphi 0, %s49
      %s67 = sphi 0, %s67
      %s69 = sphi 0, %s67
      %s70 = sphi 0, %s69
      %s84 = sphi 0, %s70
      %s90 = sphi 0, %s92
      %s93 = sphi 0, %s90
      %s94 = sphi 0, %s93
      %s110 = sphi 0, %s94
    $region4: #{tpu_custom_call.1} parent=1 // loop_header_branch
      %15 = sbr.rel (%p13) target = $region8
    $region5: #{tpu_custom_call.1} parent=1 // loop_body
      %s17 = ssub.s32 %s12, 1
      %s18 = ssub.s32 %s12, 2
      %s19 = sadd.s32 %s12, 1
      %s20 = ssub.s32 %s12, %s19
      %p21 = scmp.eq.s32.totalorder %s20, 0
      %s23 = sadd.s32 %s22, 1
      %s24 = scalar_select %p21, %s22, %s23
      %p27 = pneg %p21
      %p28 = scmp.eq.s32.totalorder %s12, 7
      %p29 = por %p27, %p28
      %p30 = scmp.ne.s32.totalorder %s22, %s25
      %p31 = scmp.eq.s32.totalorder %s12, 0
      %p32 = por %p30, %p31
      %p33 = scmp.ne.s32.totalorder %s22, %s25
      %p34 = scmp.eq.s32.totalorder %s17, 7
      %p35 = por %p33, %p34
      %p36 = scmp.ne.s32.totalorder %s25, %s26
      %p37 = scmp.eq.s32.totalorder %s17, 0
      %p38 = por %p36, %p37
      %p39 = scmp.ne.s32.totalorder %s25, %s26
      %p40 = scmp.eq.s32.totalorder %s18, 7
      %p41 = por %p39, %p40
      %p43 = scmp.ne.s32.totalorder %s26, %s42
      %p44 = scmp.eq.s32.totalorder %s18, 0
      %p45 = por %p43, %p44
      %s47 = sadd.s32 %s46, 1
      %p50 = scmp.eq.s32.totalorder %s12, 7
      %p51 = scmp.ne.s32.totalorder %s46, %s48
      %p52 = scmp.eq.s32.totalorder %s12, 0
      %p53 = por %p51, %p52
      %p54 = scmp.ne.s32.totalorder %s46, %s48
      %p55 = scmp.eq.s32.totalorder %s17, 7
      %p56 = por %p54, %p55
      %p57 = scmp.ne.s32.totalorder %s48, %s49
      %p58 = scmp.eq.s32.totalorder %s17, 0
      %p59 = por %p57, %p58
      %p60 = scmp.ne.s32.totalorder %s48, %s49
      %p61 = scmp.eq.s32.totalorder %s18, 7
      %p62 = por %p60, %p61
      %p64 = scmp.ne.s32.totalorder %s49, %s63
      %p65 = scmp.eq.s32.totalorder %s18, 0
      %p66 = por %p64, %p65
      %s68 = sadd.s32 %s67, 1
      %p71 = scmp.eq.s32.totalorder %s12, 7
      %p72 = scmp.ne.s32.totalorder %s67, %s69
      %p73 = scmp.eq.s32.totalorder %s12, 0
      %p74 = por %p72, %p73
      %p75 = scmp.ne.s32.totalorder %s67, %s69
      %p76 = scmp.eq.s32.totalorder %s17, 7
      %p77 = por %p75, %p76
      %p78 = scmp.ne.s32.totalorder %s69, %s70
      %p79 = scmp.eq.s32.totalorder %s17, 0
      %p80 = por %p78, %p79
      %p81 = scmp.ne.s32.totalorder %s69, %s70
      %p82 = scmp.eq.s32.totalorder %s18, 7
      %p83 = por %p81, %p82
      %p85 = scmp.ne.s32.totalorder %s70, %s84
      %p86 = scmp.eq.s32.totalorder %s18, 0
      %p87 = por %p85, %p86
      %s88 = ssub.s32 %s12, %s19
      %p89 = scmp.eq.s32.totalorder %s88, 0
      %s91 = sadd.s32 %s90, 1
      %s92 = scalar_select %p89, %s90, %s91
      %p95 = pneg %p89
      %p96 = scmp.eq.s32.totalorder %s12, 7
      %p97 = por %p95, %p96
      %p98 = scmp.ne.s32.totalorder %s90, %s93
      %p99 = scmp.eq.s32.totalorder %s12, 0
      %p100 = por %p98, %p99
      %p101 = scmp.ne.s32.totalorder %s90, %s93
      %p102 = scmp.eq.s32.totalorder %s17, 7
      %p103 = por %p101, %p102
      %p104 = scmp.ne.s32.totalorder %s93, %s94
      %p105 = scmp.eq.s32.totalorder %s17, 0
      %p106 = por %p104, %p105
      %p107 = scmp.ne.s32.totalorder %s93, %s94
      %p108 = scmp.eq.s32.totalorder %s18, 7
      %p109 = por %p107, %p108
      %p111 = scmp.ne.s32.totalorder %s94, %s110
      %p112 = scmp.eq.s32.totalorder %s18, 0
      %p113 = por %p111, %p112
      %p114 = scmp.le.s32.totalorder 1, %s12
      %p115 = scmp.lt.s32.totalorder %s12, 9
      %p116 = pnand %p114, %p115
      %p117 = pneg %p116
      // Predicated region
      $region9: #{tpu_custom_call.1} parent=5 // pred_check
        _
      $region10: #{tpu_custom_call.1} parent=5 // pred_check_branch
        %119 = sbr.rel (%p116) target = $region12
      $region11: #{tpu_custom_call.1} parent=5 // pred_region
        %s120 = ssub.s32 %s12, 1
        // Predicated region
        $region13: #{tpu_custom_call.1} parent=11 // pred_check
          %p121 = pneg %p59
        $region14: #{tpu_custom_call.1} parent=11 // pred_check_branch
          %123 = sbr.rel (%p121) target = $region16
        $region15: #{tpu_custom_call.1} parent=11 // pred_region
          _
        $region16: #{tpu_custom_call.1} parent=11 // pred_fallthru
          _
        // Predicated region
        $region17: #{tpu_custom_call.1} parent=11 // pred_check
          %p124 = pneg %p80
        $region18: #{tpu_custom_call.1} parent=11 // pred_check_branch
          %126 = sbr.rel (%p124) target = $region20
        $region19: #{tpu_custom_call.1} parent=11 // pred_region
          _
        $region20: #{tpu_custom_call.1} parent=11 // pred_fallthru
          _
      $region12: #{tpu_custom_call.1} parent=5 // pred_fallthru
        _
      %p127 = scmp.lt.s32.totalorder %s12, 8
      // Predicated region
      $region21: #{tpu_custom_call.1} parent=5 // pred_check
        %p128 = pneg %p127
      $region22: #{tpu_custom_call.1} parent=5 // pred_check_branch
        %130 = sbr.rel (%p128) target = $region24
      $region23: #{tpu_custom_call.1} parent=5 // pred_region
        // Predicated region
        $region25: #{tpu_custom_call.1} parent=23 // pred_check
          %p131 = pneg %p32
        $region26: #{tpu_custom_call.1} parent=23 // pred_check_branch
          %133 = sbr.rel (%p131) target = $region28
        $region27: #{tpu_custom_call.1} parent=23 // pred_region
          %p134 = scmp.lt.s32.totalorder %s12, 7
          %s135 = scalar_select %p134, %s12, 7
          %s136 = smul.addr %s135, 108
          %s137 = smul.addr %s136, 4
          %s138 = scalar_lea.vmem %s0, %s137
        $region28: #{tpu_custom_call.1} parent=23 // pred_fallthru
          _
      $region24: #{tpu_custom_call.1} parent=5 // pred_fallthru
        _
      %p139 = scmp.le.s32.totalorder 1, %s12
      %p140 = scmp.lt.s32.totalorder %s12, 9
      %p141 = pnand %p139, %p140
      %p142 = pneg %p141
      // Predicated region
      $region29: #{tpu_custom_call.1} parent=5 // pred_check
        _
      $region30: #{tpu_custom_call.1} parent=5 // pred_check_branch
        %144 = sbr.rel (%p141) target = $region32
      $region31: #{tpu_custom_call.1} parent=5 // pred_region
        %s145 = ssub.s32 %s12, 1
        %p146 = scmp.lt.s32.totalorder %s17, 7
        %s147 = scalar_select %p146, %s17, 7
        %s148 = smul.addr %s147, 108
        %s149 = smul.addr %s148, 4
        %s150 = scalar_lea.vmem %s0, %s149
        %p151 = pneg %p38
        %p152 = pneg %p35
        %p153 = pneg %p59
        %p154 = pneg %p56
        %p155 = pneg %p80
        %p156 = pneg %p77
        %p157 = pneg %p106
        %p158 = pneg %p103
        %s159 = sand.u32 %s93, 1
        %s160 = scalar_lea.sflag [#allocation3], %s159
        %s161 = sand.u32 %s93, 1
        %s162 = smul.addr %s161, 256
        %s163 = scalar_lea.vmem [#allocation2], %s162
        %p164 = scmp.lt.s32.totalorder %s17, 7
        %s165 = scalar_select %p164, %s17, 7
        %s166 = smul.addr %s165, 108
        %s167 = smul.addr %s166, 4
        %s168 = scalar_lea.vmem %s0, %s167
        %v170 = vld [vmem:[%s168] sm:$0xf]
        %v171 = vld [vmem:[%s168 + $0x4] sm:$0xf]
        %v172 = vld [vmem:[%s168 + $0x8] sm:$0x1]
        %v173 = vld [vmem:[%s168 + $0xc] sm:$0xf]
        %v174 = vld [vmem:[%s168 + $0x10] sm:$0xf]
        %v175 = vld [vmem:[%s168 + $0x14] sm:$0x1]
        %v176 = vld [vmem:[%s168 + $0x18] sm:$0xf]
        %v177 = vld [vmem:[%s168 + $0x1c] sm:$0xf]
        %v178 = vld [vmem:[%s168 + $0x20] sm:$0x1]
        %v179 = vld [vmem:[%s168 + $0x24] sm:$0xf]
        %v180 = vld [vmem:[%s168 + $0x28] sm:$0xf]
        %v181 = vld [vmem:[%s168 + $0x2c] sm:$0x1]
        %v182 = vld [vmem:[%s168 + $0x30] sm:$0xf]
        %v183 = vld [vmem:[%s168 + $0x34] sm:$0xf]
        %v184 = vld [vmem:[%s168 + $0x38] sm:$0x1]
        %v185 = vld [vmem:[%s168 + $0x3c] sm:$0xf]
        %v186 = vld [vmem:[%s168 + $0x40] sm:$0xf]
        %v187 = vld [vmem:[%s168 + $0x44] sm:$0x1]
        %v188 = vld [vmem:[%s168 + $0x48] sm:$0xf]
        %v189 = vld [vmem:[%s168 + $0x4c] sm:$0xf]
        %v190 = vld [vmem:[%s168 + $0x50] sm:$0x1]
        %v191 = vld [vmem:[%s168 + $0x54] sm:$0xf]
        %v192 = vld [vmem:[%s168 + $0x58] sm:$0xf]
        %v193 = vld [vmem:[%s168 + $0x5c] sm:$0x1]
        %v194 = vld [vmem:[%s168 + $0x60] sm:$0xf]
        %v195 = vld [vmem:[%s168 + $0x64] sm:$0xf]
        %v196 = vld [vmem:[%s168 + $0x68] sm:$0x1]
        %v197 = vld [vmem:[%s168 + $0x6c] sm:$0xf]
        %v198 = vld [vmem:[%s168 + $0x70] sm:$0xf]
        %v199 = vld [vmem:[%s168 + $0x74] sm:$0x1]
        %v200 = vld [vmem:[%s168 + $0x78] sm:$0xf]
        %v201 = vld [vmem:[%s168 + $0x7c] sm:$0xf]
        %v202 = vld [vmem:[%s168 + $0x80] sm:$0x1]
        %v203 = vld [vmem:[%s168 + $0x84] sm:$0xf]
        %v204 = vld [vmem:[%s168 + $0x88] sm:$0xf]
        %v205 = vld [vmem:[%s168 + $0x8c] sm:$0x1]
        %v206 = vld [vmem:[%s168 + $0x90] sm:$0xf]
        %v207 = vld [vmem:[%s168 + $0x94] sm:$0xf]
        %v208 = vld [vmem:[%s168 + $0x98] sm:$0x1]
        %v209 = vld [vmem:[%s168 + $0x9c] sm:$0xf]
        %v210 = vld [vmem:[%s168 + $0xa0] sm:$0xf]
        %v211 = vld [vmem:[%s168 + $0xa4] sm:$0x1]
        %v212 = vld [vmem:[%s168 + $0xa8] sm:$0xf]
        %v213 = vld [vmem:[%s168 + $0xac] sm:$0xf]
        %v214 = vld [vmem:[%s168 + $0xb0] sm:$0x1]
        %v215 = vld [vmem:[%s168 + $0xb4] sm:$0xf]
        %v216 = vld [vmem:[%s168 + $0xb8] sm:$0xf]
        %v217 = vld [vmem:[%s168 + $0xbc] sm:$0x1]
        %v218 = vld [vmem:[%s168 + $0xc0] sm:$0xf]
        %v219 = vld [vmem:[%s168 + $0xc4] sm:$0xf]
        %v220 = vld [vmem:[%s168 + $0xc8] sm:$0x1]
        %v221 = vld [vmem:[%s168 + $0xcc] sm:$0xf]
        %v222 = vld [vmem:[%s168 + $0xd0] sm:$0xf]
        %v223 = vld [vmem:[%s168 + $0xd4] sm:$0x1]
        %v224 = vld [vmem:[%s168 + $0xd8] sm:$0xf]
        %v225 = vld [vmem:[%s168 + $0xdc] sm:$0xf]
        %v226 = vld [vmem:[%s168 + $0xe0] sm:$0x1]
        %v227 = vld [vmem:[%s168 + $0xe4] sm:$0xf]
        %v228 = vld [vmem:[%s168 + $0xe8] sm:$0xf]
        %v229 = vld [vmem:[%s168 + $0xec] sm:$0x1]
        %v230 = vld [vmem:[%s168 + $0xf0] sm:$0xf]
        %v231 = vld [vmem:[%s168 + $0xf4] sm:$0xf]
        %v232 = vld [vmem:[%s168 + $0xf8] sm:$0x1]
        %v233 = vld [vmem:[%s168 + $0xfc] sm:$0xf]
        %v234 = vld [vmem:[%s168 + $0x100] sm:$0xf]
        %v235 = vld [vmem:[%s168 + $0x104] sm:$0x1]
        %v236 = vld [vmem:[%s168 + $0x108] sm:$0xf]
        %v237 = vld [vmem:[%s168 + $0x10c] sm:$0xf]
        %v238 = vld [vmem:[%s168 + $0x110] sm:$0x1]
        %v239 = vld [vmem:[%s168 + $0x114] sm:$0xf]
        %v240 = vld [vmem:[%s168 + $0x118] sm:$0xf]
        %v241 = vld [vmem:[%s168 + $0x11c] sm:$0x1]
        %v242 = vld [vmem:[%s168 + $0x120] sm:$0xf]
        %v243 = vld [vmem:[%s168 + $0x124] sm:$0xf]
        %v244 = vld [vmem:[%s168 + $0x128] sm:$0x1]
        %v245 = vld [vmem:[%s168 + $0x12c] sm:$0xf]
        %v246 = vld [vmem:[%s168 + $0x130] sm:$0xf]
        %v247 = vld [vmem:[%s168 + $0x134] sm:$0x1]
        %v248 = vld [vmem:[%s168 + $0x138] sm:$0xf]
        %v249 = vld [vmem:[%s168 + $0x13c] sm:$0xf]
        %v250 = vld [vmem:[%s168 + $0x140] sm:$0x1]
        %v251 = vld [vmem:[%s168 + $0x144] sm:$0xf]
        %v252 = vld [vmem:[%s168 + $0x148] sm:$0xf]
        %v253 = vld [vmem:[%s168 + $0x14c] sm:$0x1]
        %v254 = vld [vmem:[%s168 + $0x150] sm:$0xf]
        %v255 = vld [vmem:[%s168 + $0x154] sm:$0xf]
        %v256 = vld [vmem:[%s168 + $0x158] sm:$0x1]
        %v257 = vld [vmem:[%s168 + $0x15c] sm:$0xf]
        %v258 = vld [vmem:[%s168 + $0x160] sm:$0xf]
        %v259 = vld [vmem:[%s168 + $0x164] sm:$0x1]
        %v260 = vld [vmem:[%s168 + $0x168] sm:$0xf]
        %v261 = vld [vmem:[%s168 + $0x16c] sm:$0xf]
        %v262 = vld [vmem:[%s168 + $0x170] sm:$0x1]
        %v263 = vld [vmem:[%s168 + $0x174] sm:$0xf]
        %v264 = vld [vmem:[%s168 + $0x178] sm:$0xf]
        %v265 = vld [vmem:[%s168 + $0x17c] sm:$0x1]
        %v266 = vld [vmem:[%s168 + $0x180] sm:$0xf]
        %v267 = vld [vmem:[%s168 + $0x184] sm:$0xf]
        %v268 = vld [vmem:[%s168 + $0x188] sm:$0x1]
        %v269 = vld [vmem:[%s168 + $0x18c] sm:$0xf]
        %v270 = vld [vmem:[%s168 + $0x190] sm:$0xf]
        %v271 = vld [vmem:[%s168 + $0x194] sm:$0x1]
        %v272 = vld [vmem:[%s168 + $0x198] sm:$0xf]
        %v273 = vld [vmem:[%s168 + $0x19c] sm:$0xf]
        %v274 = vld [vmem:[%s168 + $0x1a0] sm:$0x1]
        %v275 = vld [vmem:[%s168 + $0x1a4] sm:$0xf]
        %v276 = vld [vmem:[%s168 + $0x1a8] sm:$0xf]
        %v277 = vld [vmem:[%s168 + $0x1ac] sm:$0x1]
        %vm278 = vsmask.f32 3328
        %vm279 = vsmask.f32 7440
        %vm280 = vmor %vm278, %vm279
        %v282 = vshrl.u32 %v170, 16
        %v284 = vrot.slane %v282, 4
        %v285 = vshll.u32 %v170, 16
        %v287 = vrot.slane %v285, 5
        %v288 = vor.u32 %v284, %v287
        %v289 = vrot.slane %v288, 4
        %v291 = vshll.u32 %v171, 16
        %v293 = vrot.slane %v291, 5
        %v294 = vsel %vm280, %v289, %v293
        %v295 = vshrl.u32 %v171, 16
        %v297 = vrot.slane %v295, 4
        %v298 = vor.u32 %v297, %v293
        %v299 = vrot.slane %v298, 4
        %v301 = vshll.u32 %v172, 16
        %v303 = vrot.slane %v301, 5
        %v304 = vsel %vm280, %v299, %v303
        %v306 = vshrl.u32 %v173, 16
        %v308 = vrot.slane %v306, 4
        %v309 = vshll.u32 %v173, 16
        %v311 = vrot.slane %v309, 5
        %v312 = vor.u32 %v308, %v311
        %v313 = vrot.slane %v312, 4
        %v315 = vshll.u32 %v174, 16
        %v317 = vrot.slane %v315, 5
        %v318 = vsel %vm280, %v313, %v317
        %v319 = vshrl.u32 %v174, 16
        %v321 = vrot.slane %v319, 4
        %v322 = vor.u32 %v321, %v317
        %v323 = vrot.slane %v322, 4
        %v325 = vshll.u32 %v175, 16
        %v327 = vrot.slane %v325, 5
        %v328 = vsel %vm280, %v323, %v327
        %v330 = vshrl.u32 %v176, 16
        %v332 = vrot.slane %v330, 4
        %v333 = vshll.u32 %v176, 16
        %v335 = vrot.slane %v333, 5
        %v336 = vor.u32 %v332, %v335
        %v337 = vrot.slane %v336, 4
        %v339 = vshll.u32 %v177, 16
        %v341 = vrot.slane %v339, 5
        %v342 = vsel %vm280, %v337, %v341
        %v343 = vshrl.u32 %v177, 16
        %v345 = vrot.slane %v343, 4
        %v346 = vor.u32 %v345, %v341
        %v347 = vrot.slane %v346, 4
        %v349 = vshll.u32 %v178, 16
        %v351 = vrot.slane %v349, 5
        %v352 = vsel %vm280, %v347, %v351
        %v354 = vshrl.u32 %v179, 16
        %v356 = vrot.slane %v354, 4
        %v357 = vshll.u32 %v179, 16
        %v359 = vrot.slane %v357, 5
        %v360 = vor.u32 %v356, %v359
        %v361 = vrot.slane %v360, 4
        %v363 = vshll.u32 %v180, 16
        %v365 = vrot.slane %v363, 5
        %v366 = vsel %vm280, %v361, %v365
        %v367 = vshrl.u32 %v180, 16
        %v369 = vrot.slane %v367, 4
        %v370 = vor.u32 %v369, %v365
        %v371 = vrot.slane %v370, 4
        %v373 = vshll.u32 %v181, 16
        %v375 = vrot.slane %v373, 5
        %v376 = vsel %vm280, %v371, %v375
        %v378 = vshrl.u32 %v182, 16
        %v380 = vrot.slane %v378, 4
        %v381 = vshll.u32 %v182, 16
        %v383 = vrot.slane %v381, 5
        %v384 = vor.u32 %v380, %v383
        %v385 = vrot.slane %v384, 4
        %v387 = vshll.u32 %v183, 16
        %v389 = vrot.slane %v387, 5
        %v390 = vsel %vm280, %v385, %v389
        %v391 = vshrl.u32 %v183, 16
        %v393 = vrot.slane %v391, 4
        %v394 = vor.u32 %v393, %v389
        %v395 = vrot.slane %v394, 4
        %v397 = vshll.u32 %v184, 16
        %v399 = vrot.slane %v397, 5
        %v400 = vsel %vm280, %v395, %v399
        %v402 = vshrl.u32 %v185, 16
        %v404 = vrot.slane %v402, 4
        %v405 = vshll.u32 %v185, 16
        %v407 = vrot.slane %v405, 5
        %v408 = vor.u32 %v404, %v407
        %v409 = vrot.slane %v408, 4
        %v411 = vshll.u32 %v186, 16
        %v413 = vrot.slane %v411, 5
        %v414 = vsel %vm280, %v409, %v413
        %v415 = vshrl.u32 %v186, 16
        %v417 = vrot.slane %v415, 4
        %v418 = vor.u32 %v417, %v413
        %v419 = vrot.slane %v418, 4
        %v421 = vshll.u32 %v187, 16
        %v423 = vrot.slane %v421, 5
        %v424 = vsel %vm280, %v419, %v423
        %v426 = vshrl.u32 %v188, 16
        %v428 = vrot.slane %v426, 4
        %v429 = vshll.u32 %v188, 16
        %v431 = vrot.slane %v429, 5
        %v432 = vor.u32 %v428, %v431
        %v433 = vrot.slane %v432, 4
        %v435 = vshll.u32 %v189, 16
        %v437 = vrot.slane %v435, 5
        %v438 = vsel %vm280, %v433, %v437
        %v439 = vshrl.u32 %v189, 16
        %v441 = vrot.slane %v439, 4
        %v442 = vor.u32 %v441, %v437
        %v443 = vrot.slane %v442, 4
        %v445 = vshll.u32 %v190, 16
        %v447 = vrot.slane %v445, 5
        %v448 = vsel %vm280, %v443, %v447
        %v450 = vshrl.u32 %v191, 16
        %v452 = vrot.slane %v450, 4
        %v453 = vshll.u32 %v191, 16
        %v455 = vrot.slane %v453, 5
        %v456 = vor.u32 %v452, %v455
        %v457 = vrot.slane %v456, 4
        %v459 = vshll.u32 %v192, 16
        %v461 = vrot.slane %v459, 5
        %v462 = vsel %vm280, %v457, %v461
        %v463 = vshrl.u32 %v192, 16
        %v465 = vrot.slane %v463, 4
        %v466 = vor.u32 %v465, %v461
        %v467 = vrot.slane %v466, 4
        %v469 = vshll.u32 %v193, 16
        %v471 = vrot.slane %v469, 5
        %v472 = vsel %vm280, %v467, %v471
        %v474 = vshrl.u32 %v194, 16
        %v476 = vrot.slane %v474, 4
        %v477 = vshll.u32 %v194, 16
        %v479 = vrot.slane %v477, 5
        %v480 = vor.u32 %v476, %v479
        %v481 = vrot.slane %v480, 4
        %v483 = vshll.u32 %v195, 16
        %v485 = vrot.slane %v483, 5
        %v486 = vsel %vm280, %v481, %v485
        %v487 = vshrl.u32 %v195, 16
        %v489 = vrot.slane %v487, 4
        %v490 = vor.u32 %v489, %v485
        %v491 = vrot.slane %v490, 4
        %v493 = vshll.u32 %v196, 16
        %v495 = vrot.slane %v493, 5
        %v496 = vsel %vm280, %v491, %v495
        %v498 = vshrl.u32 %v197, 16
        %v500 = vrot.slane %v498, 4
        %v501 = vshll.u32 %v197, 16
        %v503 = vrot.slane %v501, 5
        %v504 = vor.u32 %v500, %v503
        %v505 = vrot.slane %v504, 4
        %v507 = vshll.u32 %v198, 16
        %v509 = vrot.slane %v507, 5
        %v510 = vsel %vm280, %v505, %v509
        %v511 = vshrl.u32 %v198, 16
        %v513 = vrot.slane %v511, 4
        %v514 = vor.u32 %v513, %v509
        %v515 = vrot.slane %v514, 4
        %v517 = vshll.u32 %v199, 16
        %v519 = vrot.slane %v517, 5
        %v520 = vsel %vm280, %v515, %v519
        %v522 = vshrl.u32 %v200, 16
        %v524 = vrot.slane %v522, 4
        %v525 = vshll.u32 %v200, 16
        %v527 = vrot.slane %v525, 5
        %v528 = vor.u32 %v524, %v527
        %v529 = vrot.slane %v528, 4
        %v531 = vshll.u32 %v201, 16
        %v533 = vrot.slane %v531, 5
        %v534 = vsel %vm280, %v529, %v533
        %v535 = vshrl.u32 %v201, 16
        %v537 = vrot.slane %v535, 4
        %v538 = vor.u32 %v537, %v533
        %v539 = vrot.slane %v538, 4
        %v541 = vshll.u32 %v202, 16
        %v543 = vrot.slane %v541, 5
        %v544 = vsel %vm280, %v539, %v543
        %v546 = vshrl.u32 %v203, 16
        %v548 = vrot.slane %v546, 4
        %v549 = vshll.u32 %v203, 16
        %v551 = vrot.slane %v549, 5
        %v552 = vor.u32 %v548, %v551
        %v553 = vrot.slane %v552, 4
        %v555 = vshll.u32 %v204, 16
        %v557 = vrot.slane %v555, 5
        %v558 = vsel %vm280, %v553, %v557
        %v559 = vshrl.u32 %v204, 16
        %v561 = vrot.slane %v559, 4
        %v562 = vor.u32 %v561, %v557
        %v563 = vrot.slane %v562, 4
        %v565 = vshll.u32 %v205, 16
        %v567 = vrot.slane %v565, 5
        %v568 = vsel %vm280, %v563, %v567
        %v570 = vshrl.u32 %v206, 16
        %v572 = vrot.slane %v570, 4
        %v573 = vshll.u32 %v206, 16
        %v575 = vrot.slane %v573, 5
        %v576 = vor.u32 %v572, %v575
        %v577 = vrot.slane %v576, 4
        %v579 = vshll.u32 %v207, 16
        %v581 = vrot.slane %v579, 5
        %v582 = vsel %vm280, %v577, %v581
        %v583 = vshrl.u32 %v207, 16
        %v585 = vrot.slane %v583, 4
        %v586 = vor.u32 %v585, %v581
        %v587 = vrot.slane %v586, 4
        %v589 = vshll.u32 %v208, 16
        %v591 = vrot.slane %v589, 5
        %v592 = vsel %vm280, %v587, %v591
        %v594 = vshrl.u32 %v209, 16
        %v596 = vrot.slane %v594, 4
        %v597 = vshll.u32 %v209, 16
        %v599 = vrot.slane %v597, 5
        %v600 = vor.u32 %v596, %v599
        %v601 = vrot.slane %v600, 4
        %v603 = vshll.u32 %v210, 16
        %v605 = vrot.slane %v603, 5
        %v606 = vsel %vm280, %v601, %v605
        %v607 = vshrl.u32 %v210, 16
        %v609 = vrot.slane %v607, 4
        %v610 = vor.u32 %v609, %v605
        %v611 = vrot.slane %v610, 4
        %v613 = vshll.u32 %v211, 16
        %v615 = vrot.slane %v613, 5
        %v616 = vsel %vm280, %v611, %v615
        %v618 = vshrl.u32 %v212, 16
        %v620 = vrot.slane %v618, 4
        %v621 = vshll.u32 %v212, 16
        %v623 = vrot.slane %v621, 5
        %v624 = vor.u32 %v620, %v623
        %v625 = vrot.slane %v624, 4
        %v627 = vshll.u32 %v213, 16
        %v629 = vrot.slane %v627, 5
        %v630 = vsel %vm280, %v625, %v629
        %v631 = vshrl.u32 %v213, 16
        %v633 = vrot.slane %v631, 4
        %v634 = vor.u32 %v633, %v629
        %v635 = vrot.slane %v634, 4
        %v637 = vshll.u32 %v214, 16
        %v639 = vrot.slane %v637, 5
        %v640 = vsel %vm280, %v635, %v639
        %v642 = vshrl.u32 %v215, 16
        %v644 = vrot.slane %v642, 4
        %v645 = vshll.u32 %v215, 16
        %v647 = vrot.slane %v645, 5
        %v648 = vor.u32 %v644, %v647
        %v649 = vrot.slane %v648, 4
        %v651 = vshll.u32 %v216, 16
        %v653 = vrot.slane %v651, 5
        %v654 = vsel %vm280, %v649, %v653
        %v655 = vshrl.u32 %v216, 16
        %v657 = vrot.slane %v655, 4
        %v658 = vor.u32 %v657, %v653
        %v659 = vrot.slane %v658, 4
        %v661 = vshll.u32 %v217, 16
        %v663 = vrot.slane %v661, 5
        %v664 = vsel %vm280, %v659, %v663
        %v666 = vshrl.u32 %v224, 16
        %v668 = vrot.slane %v666, 4
        %v669 = vshll.u32 %v224, 16
        %v671 = vrot.slane %v669, 5
        %v672 = vor.u32 %v668, %v671
        %v673 = vrot.slane %v672, 4
        %v675 = vshll.u32 %v225, 16
        %v677 = vrot.slane %v675, 5
        %v678 = vsel %vm280, %v673, %v677
        %v679 = vshrl.u32 %v225, 16
        %v681 = vrot.slane %v679, 4
        %v682 = vor.u32 %v681, %v677
        %v683 = vrot.slane %v682, 4
        %v685 = vshll.u32 %v226, 16
        %v687 = vrot.slane %v685, 5
        %v688 = vsel %vm280, %v683, %v687
        %v690 = vshrl.u32 %v227, 16
        %v692 = vrot.slane %v690, 4
        %v693 = vshll.u32 %v227, 16
        %v695 = vrot.slane %v693, 5
        %v696 = vor.u32 %v692, %v695
        %v697 = vrot.slane %v696, 4
        %v699 = vshll.u32 %v228, 16
        %v701 = vrot.slane %v699, 5
        %v702 = vsel %vm280, %v697, %v701
        %v703 = vshrl.u32 %v228, 16
        %v705 = vrot.slane %v703, 4
        %v706 = vor.u32 %v705, %v701
        %v707 = vrot.slane %v706, 4
        %v709 = vshll.u32 %v229, 16
        %v711 = vrot.slane %v709, 5
        %v712 = vsel %vm280, %v707, %v711
        %v714 = vshrl.u32 %v230, 16
        %v716 = vrot.slane %v714, 4
        %v717 = vshll.u32 %v230, 16
        %v719 = vrot.slane %v717, 5
        %v720 = vor.u32 %v716, %v719
        %v721 = vrot.slane %v720, 4
        %v723 = vshll.u32 %v231, 16
        %v725 = vrot.slane %v723, 5
        %v726 = vsel %vm280, %v721, %v725
        %v727 = vshrl.u32 %v231, 16
        %v729 = vrot.slane %v727, 4
        %v730 = vor.u32 %v729, %v725
        %v731 = vrot.slane %v730, 4
        %v733 = vshll.u32 %v232, 16
        %v735 = vrot.slane %v733, 5
        %v736 = vsel %vm280, %v731, %v735
        %v738 = vshrl.u32 %v233, 16
        %v740 = vrot.slane %v738, 4
        %v741 = vshll.u32 %v233, 16
        %v743 = vrot.slane %v741, 5
        %v744 = vor.u32 %v740, %v743
        %v745 = vrot.slane %v744, 4
        %v747 = vshll.u32 %v234, 16
        %v749 = vrot.slane %v747, 5
        %v750 = vsel %vm280, %v745, %v749
        %v751 = vshrl.u32 %v234, 16
        %v753 = vrot.slane %v751, 4
        %v754 = vor.u32 %v753, %v749
        %v755 = vrot.slane %v754, 4
        %v757 = vshll.u32 %v235, 16
        %v759 = vrot.slane %v757, 5
        %v760 = vsel %vm280, %v755, %v759
        %v762 = vshrl.u32 %v236, 16
        %v764 = vrot.slane %v762, 4
        %v765 = vshll.u32 %v236, 16
        %v767 = vrot.slane %v765, 5
        %v768 = vor.u32 %v764, %v767
        %v769 = vrot.slane %v768, 4
        %v771 = vshll.u32 %v237, 16
        %v773 = vrot.slane %v771, 5
        %v774 = vsel %vm280, %v769, %v773
        %v775 = vshrl.u32 %v237, 16
        %v777 = vrot.slane %v775, 4
        %v778 = vor.u32 %v777, %v773
        %v779 = vrot.slane %v778, 4
        %v781 = vshll.u32 %v238, 16
        %v783 = vrot.slane %v781, 5
        %v784 = vsel %vm280, %v779, %v783
        %v786 = vshrl.u32 %v239, 16
        %v788 = vrot.slane %v786, 4
        %v789 = vshll.u32 %v239, 16
        %v791 = vrot.slane %v789, 5
        %v792 = vor.u32 %v788, %v791
        %v793 = vrot.slane %v792, 4
        %v795 = vshll.u32 %v240, 16
        %v797 = vrot.slane %v795, 5
        %v798 = vsel %vm280, %v793, %v797
        %v799 = vshrl.u32 %v240, 16
        %v801 = vrot.slane %v799, 4
        %v802 = vor.u32 %v801, %v797
        %v803 = vrot.slane %v802, 4
        %v805 = vshll.u32 %v241, 16
        %v807 = vrot.slane %v805, 5
        %v808 = vsel %vm280, %v803, %v807
        %v810 = vshrl.u32 %v242, 16
        %v812 = vrot.slane %v810, 4
        %v813 = vshll.u32 %v242, 16
        %v815 = vrot.slane %v813, 5
        %v816 = vor.u32 %v812, %v815
        %v817 = vrot.slane %v816, 4
        %v819 = vshll.u32 %v243, 16
        %v821 = vrot.slane %v819, 5
        %v822 = vsel %vm280, %v817, %v821
        %v823 = vshrl.u32 %v243, 16
        %v825 = vrot.slane %v823, 4
        %v826 = vor.u32 %v825, %v821
        %v827 = vrot.slane %v826, 4
        %v829 = vshll.u32 %v244, 16
        %v831 = vrot.slane %v829, 5
        %v832 = vsel %vm280, %v827, %v831
        %v834 = vshrl.u32 %v245, 16
        %v836 = vrot.slane %v834, 4
        %v837 = vshll.u32 %v245, 16
        %v839 = vrot.slane %v837, 5
        %v840 = vor.u32 %v836, %v839
        %v841 = vrot.slane %v840, 4
        %v843 = vshll.u32 %v246, 16
        %v845 = vrot.slane %v843, 5
        %v846 = vsel %vm280, %v841, %v845
        %v847 = vshrl.u32 %v246, 16
        %v849 = vrot.slane %v847, 4
        %v850 = vor.u32 %v849, %v845
        %v851 = vrot.slane %v850, 4
        %v853 = vshll.u32 %v247, 16
        %v855 = vrot.slane %v853, 5
        %v856 = vsel %vm280, %v851, %v855
        %v858 = vshrl.u32 %v248, 16
        %v860 = vrot.slane %v858, 4
        %v861 = vshll.u32 %v248, 16
        %v863 = vrot.slane %v861, 5
        %v864 = vor.u32 %v860, %v863
        %v865 = vrot.slane %v864, 4
        %v867 = vshll.u32 %v249, 16
        %v869 = vrot.slane %v867, 5
        %v870 = vsel %vm280, %v865, %v869
        %v871 = vshrl.u32 %v249, 16
        %v873 = vrot.slane %v871, 4
        %v874 = vor.u32 %v873, %v869
        %v875 = vrot.slane %v874, 4
        %v877 = vshll.u32 %v250, 16
        %v879 = vrot.slane %v877, 5
        %v880 = vsel %vm280, %v875, %v879
        %v882 = vshrl.u32 %v251, 16
        %v884 = vrot.slane %v882, 4
        %v885 = vshll.u32 %v251, 16
        %v887 = vrot.slane %v885, 5
        %v888 = vor.u32 %v884, %v887
        %v889 = vrot.slane %v888, 4
        %v891 = vshll.u32 %v252, 16
        %v893 = vrot.slane %v891, 5
        %v894 = vsel %vm280, %v889, %v893
        %v895 = vshrl.u32 %v252, 16
        %v897 = vrot.slane %v895, 4
        %v898 = vor.u32 %v897, %v893
        %v899 = vrot.slane %v898, 4
        %v901 = vshll.u32 %v253, 16
        %v903 = vrot.slane %v901, 5
        %v904 = vsel %vm280, %v899, %v903
        %v906 = vshrl.u32 %v254, 16
        %v908 = vrot.slane %v906, 4
        %v909 = vshll.u32 %v254, 16
        %v911 = vrot.slane %v909, 5
        %v912 = vor.u32 %v908, %v911
        %v913 = vrot.slane %v912, 4
        %v915 = vshll.u32 %v255, 16
        %v917 = vrot.slane %v915, 5
        %v918 = vsel %vm280, %v913, %v917
        %v919 = vshrl.u32 %v255, 16
        %v921 = vrot.slane %v919, 4
        %v922 = vor.u32 %v921, %v917
        %v923 = vrot.slane %v922, 4
        %v925 = vshll.u32 %v256, 16
        %v927 = vrot.slane %v925, 5
        %v928 = vsel %vm280, %v923, %v927
        %v930 = vshrl.u32 %v257, 16
        %v932 = vrot.slane %v930, 4
        %v933 = vshll.u32 %v257, 16
        %v935 = vrot.slane %v933, 5
        %v936 = vor.u32 %v932, %v935
        %v937 = vrot.slane %v936, 4
        %v939 = vshll.u32 %v258, 16
        %v941 = vrot.slane %v939, 5
        %v942 = vsel %vm280, %v937, %v941
        %v943 = vshrl.u32 %v258, 16
        %v945 = vrot.slane %v943, 4
        %v946 = vor.u32 %v945, %v941
        %v947 = vrot.slane %v946, 4
        %v949 = vshll.u32 %v259, 16
        %v951 = vrot.slane %v949, 5
        %v952 = vsel %vm280, %v947, %v951
        %v954 = vshrl.u32 %v260, 16
        %v956 = vrot.slane %v954, 4
        %v957 = vshll.u32 %v260, 16
        %v959 = vrot.slane %v957, 5
        %v960 = vor.u32 %v956, %v959
        %v961 = vrot.slane %v960, 4
        %v963 = vshll.u32 %v261, 16
        %v965 = vrot.slane %v963, 5
        %v966 = vsel %vm280, %v961, %v965
        %v967 = vshrl.u32 %v261, 16
        %v969 = vrot.slane %v967, 4
        %v970 = vor.u32 %v969, %v965
        %v971 = vrot.slane %v970, 4
        %v973 = vshll.u32 %v262, 16
        %v975 = vrot.slane %v973, 5
        %v976 = vsel %vm280, %v971, %v975
        %v978 = vshrl.u32 %v263, 16
        %v980 = vrot.slane %v978, 4
        %v981 = vshll.u32 %v263, 16
        %v983 = vrot.slane %v981, 5
        %v984 = vor.u32 %v980, %v983
        %v985 = vrot.slane %v984, 4
        %v987 = vshll.u32 %v264, 16
        %v989 = vrot.slane %v987, 5
        %v990 = vsel %vm280, %v985, %v989
        %v991 = vshrl.u32 %v264, 16
        %v993 = vrot.slane %v991, 4
        %v994 = vor.u32 %v993, %v989
        %v995 = vrot.slane %v994, 4
        %v997 = vshll.u32 %v265, 16
        %v999 = vrot.slane %v997, 5
        %v1000 = vsel %vm280, %v995, %v999
        %v1002 = vshrl.u32 %v266, 16
        %v1004 = vrot.slane %v1002, 4
        %v1005 = vshll.u32 %v266, 16
        %v1007 = vrot.slane %v1005, 5
        %v1008 = vor.u32 %v1004, %v1007
        %v1009 = vrot.slane %v1008, 4
        %v1011 = vshll.u32 %v267, 16
        %v1013 = vrot.slane %v1011, 5
        %v1014 = vsel %vm280, %v1009, %v1013
        %v1015 = vshrl.u32 %v267, 16
        %v1017 = vrot.slane %v1015, 4
        %v1018 = vor.u32 %v1017, %v1013
        %v1019 = vrot.slane %v1018, 4
        %v1021 = vshll.u32 %v268, 16
        %v1023 = vrot.slane %v1021, 5
        %v1024 = vsel %vm280, %v1019, %v1023
        %v1026 = vshrl.u32 %v269, 16
        %v1028 = vrot.slane %v1026, 4
        %v1029 = vshll.u32 %v269, 16
        %v1031 = vrot.slane %v1029, 5
        %v1032 = vor.u32 %v1028, %v1031
        %v1033 = vrot.slane %v1032, 4
        %v1035 = vshll.u32 %v270, 16
        %v1037 = vrot.slane %v1035, 5
        %v1038 = vsel %vm280, %v1033, %v1037
        %v1039 = vshrl.u32 %v270, 16
        %v1041 = vrot.slane %v1039, 4
        %v1042 = vor.u32 %v1041, %v1037
        %v1043 = vrot.slane %v1042, 4
        %v1045 = vshll.u32 %v271, 16
        %v1047 = vrot.slane %v1045, 5
        %v1048 = vsel %vm280, %v1043, %v1047
        %vm1145 = vcmask 1042432
        %vm1146 = vcmask 1046532
        %vm1147 = vmor %vm1145, %vm1146
        %v1148 = vrot.slane %v170, 5
        %v1149 = vrot.slane %v1148, 4
        %v1150 = vrot.slane %v171, 5
        %v1151 = vsel %vm1147, %v1149, %v1150
        %v1152 = vrot.slane %v1150, 4
        %v1153 = vrot.slane %v172, 5
        %v1154 = vsel %vm1147, %v1152, %v1153
        %v1155 = vrot.slane %v173, 5
        %v1156 = vrot.slane %v1155, 4
        %v1157 = vrot.slane %v174, 5
        %v1158 = vsel %vm1147, %v1156, %v1157
        %v1159 = vrot.slane %v1157, 4
        %v1160 = vrot.slane %v175, 5
        %v1161 = vsel %vm1147, %v1159, %v1160
        %v1162 = vrot.slane %v176, 5
        %v1163 = vrot.slane %v1162, 4
        %v1164 = vrot.slane %v177, 5
        %v1165 = vsel %vm1147, %v1163, %v1164
        %v1166 = vrot.slane %v1164, 4
        %v1167 = vrot.slane %v178, 5
        %v1168 = vsel %vm1147, %v1166, %v1167
        %v1169 = vrot.slane %v179, 5
        %v1170 = vrot.slane %v1169, 4
        %v1171 = vrot.slane %v180, 5
        %v1172 = vsel %vm1147, %v1170, %v1171
        %v1173 = vrot.slane %v1171, 4
        %v1174 = vrot.slane %v181, 5
        %v1175 = vsel %vm1147, %v1173, %v1174
        %v1176 = vrot.slane %v182, 5
        %v1177 = vrot.slane %v1176, 4
        %v1178 = vrot.slane %v183, 5
        %v1179 = vsel %vm1147, %v1177, %v1178
        %v1180 = vrot.slane %v1178, 4
        %v1181 = vrot.slane %v184, 5
        %v1182 = vsel %vm1147, %v1180, %v1181
        %v1183 = vrot.slane %v185, 5
        %v1184 = vrot.slane %v1183, 4
        %v1185 = vrot.slane %v186, 5
        %v1186 = vsel %vm1147, %v1184, %v1185
        %v1187 = vrot.slane %v1185, 4
        %v1188 = vrot.slane %v187, 5
        %v1189 = vsel %vm1147, %v1187, %v1188
        %v1190 = vrot.slane %v188, 5
        %v1191 = vrot.slane %v1190, 4
        %v1192 = vrot.slane %v189, 5
        %v1193 = vsel %vm1147, %v1191, %v1192
        %v1194 = vrot.slane %v1192, 4
        %v1195 = vrot.slane %v190, 5
        %v1196 = vsel %vm1147, %v1194, %v1195
        %v1197 = vrot.slane %v191, 5
        %v1198 = vrot.slane %v1197, 4
        %v1199 = vrot.slane %v192, 5
        %v1200 = vsel %vm1147, %v1198, %v1199
        %v1201 = vrot.slane %v1199, 4
        %v1202 = vrot.slane %v193, 5
        %v1203 = vsel %vm1147, %v1201, %v1202
        %v1204 = vrot.slane %v194, 5
        %v1205 = vrot.slane %v1204, 4
        %v1206 = vrot.slane %v195, 5
        %v1207 = vsel %vm1147, %v1205, %v1206
        %v1208 = vrot.slane %v1206, 4
        %v1209 = vrot.slane %v196, 5
        %v1210 = vsel %vm1147, %v1208, %v1209
        %v1211 = vrot.slane %v197, 5
        %v1212 = vrot.slane %v1211, 4
        %v1213 = vrot.slane %v198, 5
        %v1214 = vsel %vm1147, %v1212, %v1213
        %v1215 = vrot.slane %v1213, 4
        %v1216 = vrot.slane %v199, 5
        %v1217 = vsel %vm1147, %v1215, %v1216
        %v1218 = vrot.slane %v200, 5
        %v1219 = vrot.slane %v1218, 4
        %v1220 = vrot.slane %v201, 5
        %v1221 = vsel %vm1147, %v1219, %v1220
        %v1222 = vrot.slane %v1220, 4
        %v1223 = vrot.slane %v202, 5
        %v1224 = vsel %vm1147, %v1222, %v1223
        %v1225 = vrot.slane %v203, 5
        %v1226 = vrot.slane %v1225, 4
        %v1227 = vrot.slane %v204, 5
        %v1228 = vsel %vm1147, %v1226, %v1227
        %v1229 = vrot.slane %v1227, 4
        %v1230 = vrot.slane %v205, 5
        %v1231 = vsel %vm1147, %v1229, %v1230
        %v1232 = vrot.slane %v206, 5
        %v1233 = vrot.slane %v1232, 4
        %v1234 = vrot.slane %v207, 5
        %v1235 = vsel %vm1147, %v1233, %v1234
        %v1236 = vrot.slane %v1234, 4
        %v1237 = vrot.slane %v208, 5
        %v1238 = vsel %vm1147, %v1236, %v1237
        %v1239 = vrot.slane %v209, 5
        %v1240 = vrot.slane %v1239, 4
        %v1241 = vrot.slane %v210, 5
        %v1242 = vsel %vm1147, %v1240, %v1241
        %v1243 = vrot.slane %v1241, 4
        %v1244 = vrot.slane %v211, 5
        %v1245 = vsel %vm1147, %v1243, %v1244
        %v1246 = vrot.slane %v212, 5
        %v1247 = vrot.slane %v1246, 4
        %v1248 = vrot.slane %v213, 5
        %v1249 = vsel %vm1147, %v1247, %v1248
        %v1250 = vrot.slane %v1248, 4
        %v1251 = vrot.slane %v214, 5
        %v1252 = vsel %vm1147, %v1250, %v1251
        %v1253 = vrot.slane %v215, 5
        %v1254 = vrot.slane %v1253, 4
        %v1255 = vrot.slane %v216, 5
        %v1256 = vsel %vm1147, %v1254, %v1255
        %v1257 = vrot.slane %v1255, 4
        %v1258 = vrot.slane %v217, 5
        %v1259 = vsel %vm1147, %v1257, %v1258
        %v1260 = vrot.slane %v224, 5
        %v1261 = vrot.slane %v1260, 4
        %v1262 = vrot.slane %v225, 5
        %v1263 = vsel %vm1147, %v1261, %v1262
        %v1264 = vrot.slane %v1262, 4
        %v1265 = vrot.slane %v226, 5
        %v1266 = vsel %vm1147, %v1264, %v1265
        %v1267 = vrot.slane %v227, 5
        %v1268 = vrot.slane %v1267, 4
        %v1269 = vrot.slane %v228, 5
        %v1270 = vsel %vm1147, %v1268, %v1269
        %v1271 = vrot.slane %v1269, 4
        %v1272 = vrot.slane %v229, 5
        %v1273 = vsel %vm1147, %v1271, %v1272
        %v1274 = vrot.slane %v230, 5
        %v1275 = vrot.slane %v1274, 4
        %v1276 = vrot.slane %v231, 5
        %v1277 = vsel %vm1147, %v1275, %v1276
        %v1278 = vrot.slane %v1276, 4
        %v1279 = vrot.slane %v232, 5
        %v1280 = vsel %vm1147, %v1278, %v1279
        %v1281 = vrot.slane %v233, 5
        %v1282 = vrot.slane %v1281, 4
        %v1283 = vrot.slane %v234, 5
        %v1284 = vsel %vm1147, %v1282, %v1283
        %v1285 = vrot.slane %v1283, 4
        %v1286 = vrot.slane %v235, 5
        %v1287 = vsel %vm1147, %v1285, %v1286
        %v1288 = vrot.slane %v236, 5
        %v1289 = vrot.slane %v1288, 4
        %v1290 = vrot.slane %v237, 5
        %v1291 = vsel %vm1147, %v1289, %v1290
        %v1292 = vrot.slane %v1290, 4
        %v1293 = vrot.slane %v238, 5
        %v1294 = vsel %vm1147, %v1292, %v1293
        %v1295 = vrot.slane %v239, 5
        %v1296 = vrot.slane %v1295, 4
        %v1297 = vrot.slane %v240, 5
        %v1298 = vsel %vm1147, %v1296, %v1297
        %v1299 = vrot.slane %v1297, 4
        %v1300 = vrot.slane %v241, 5
        %v1301 = vsel %vm1147, %v1299, %v1300
        %v1302 = vrot.slane %v242, 5
        %v1303 = vrot.slane %v1302, 4
        %v1304 = vrot.slane %v243, 5
        %v1305 = vsel %vm1147, %v1303, %v1304
        %v1306 = vrot.slane %v1304, 4
        %v1307 = vrot.slane %v244, 5
        %v1308 = vsel %vm1147, %v1306, %v1307
        %v1309 = vrot.slane %v245, 5
        %v1310 = vrot.slane %v1309, 4
        %v1311 = vrot.slane %v246, 5
        %v1312 = vsel %vm1147, %v1310, %v1311
        %v1313 = vrot.slane %v1311, 4
        %v1314 = vrot.slane %v247, 5
        %v1315 = vsel %vm1147, %v1313, %v1314
        %v1316 = vrot.slane %v248, 5
        %v1317 = vrot.slane %v1316, 4
        %v1318 = vrot.slane %v249, 5
        %v1319 = vsel %vm1147, %v1317, %v1318
        %v1320 = vrot.slane %v1318, 4
        %v1321 = vrot.slane %v250, 5
        %v1322 = vsel %vm1147, %v1320, %v1321
        %v1323 = vrot.slane %v251, 5
        %v1324 = vrot.slane %v1323, 4
        %v1325 = vrot.slane %v252, 5
        %v1326 = vsel %vm1147, %v1324, %v1325
        %v1327 = vrot.slane %v1325, 4
        %v1328 = vrot.slane %v253, 5
        %v1329 = vsel %vm1147, %v1327, %v1328
        %v1330 = vrot.slane %v254, 5
        %v1331 = vrot.slane %v1330, 4
        %v1332 = vrot.slane %v255, 5
        %v1333 = vsel %vm1147, %v1331, %v1332
        %v1334 = vrot.slane %v1332, 4
        %v1335 = vrot.slane %v256, 5
        %v1336 = vsel %vm1147, %v1334, %v1335
        %v1337 = vrot.slane %v257, 5
        %v1338 = vrot.slane %v1337, 4
        %v1339 = vrot.slane %v258, 5
        %v1340 = vsel %vm1147, %v1338, %v1339
        %v1341 = vrot.slane %v1339, 4
        %v1342 = vrot.slane %v259, 5
        %v1343 = vsel %vm1147, %v1341, %v1342
        %v1344 = vrot.slane %v260, 5
        %v1345 = vrot.slane %v1344, 4
        %v1346 = vrot.slane %v261, 5
        %v1347 = vsel %vm1147, %v1345, %v1346
        %v1348 = vrot.slane %v1346, 4
        %v1349 = vrot.slane %v262, 5
        %v1350 = vsel %vm1147, %v1348, %v1349
        %v1351 = vrot.slane %v263, 5
        %v1352 = vrot.slane %v1351, 4
        %v1353 = vrot.slane %v264, 5
        %v1354 = vsel %vm1147, %v1352, %v1353
        %v1355 = vrot.slane %v1353, 4
        %v1356 = vrot.slane %v265, 5
        %v1357 = vsel %vm1147, %v1355, %v1356
        %v1358 = vrot.slane %v266, 5
        %v1359 = vrot.slane %v1358, 4
        %v1360 = vrot.slane %v267, 5
        %v1361 = vsel %vm1147, %v1359, %v1360
        %v1362 = vrot.slane %v1360, 4
        %v1363 = vrot.slane %v268, 5
        %v1364 = vsel %vm1147, %v1362, %v1363
        %v1365 = vrot.slane %v269, 5
        %v1366 = vrot.slane %v1365, 4
        %v1367 = vrot.slane %v270, 5
        %v1368 = vsel %vm1147, %v1366, %v1367
        %v1369 = vrot.slane %v1367, 4
        %v1370 = vrot.slane %v271, 5
        %v1371 = vsel %vm1147, %v1369, %v1370
        %v1373 = vshrl.u32 %v218, 16
        %v1375 = vrot.slane %v1373, 4
        %v1376 = vshll.u32 %v218, 16
        %v1378 = vrot.slane %v1376, 5
        %v1379 = vor.u32 %v1375, %v1378
        %v1380 = vrot.slane %v1379, 4
        %v1382 = vshll.u32 %v219, 16
        %v1384 = vrot.slane %v1382, 5
        %v1385 = vsel %vm280, %v1380, %v1384
        %v1386 = vshrl.u32 %v219, 16
        %v1388 = vrot.slane %v1386, 4
        %v1389 = vor.u32 %v1388, %v1384
        %v1390 = vrot.slane %v1389, 4
        %v1392 = vshll.u32 %v220, 16
        %v1394 = vrot.slane %v1392, 5
        %v1395 = vsel %vm280, %v1390, %v1394
        %v1397 = vshrl.u32 %v272, 16
        %v1399 = vrot.slane %v1397, 4
        %v1400 = vshll.u32 %v272, 16
        %v1402 = vrot.slane %v1400, 5
        %v1403 = vor.u32 %v1399, %v1402
        %v1404 = vrot.slane %v1403, 4
        %v1406 = vshll.u32 %v273, 16
        %v1408 = vrot.slane %v1406, 5
        %v1409 = vsel %vm280, %v1404, %v1408
        %v1410 = vshrl.u32 %v273, 16
        %v1412 = vrot.slane %v1410, 4
        %v1413 = vor.u32 %v1412, %v1408
        %v1414 = vrot.slane %v1413, 4
        %v1416 = vshll.u32 %v274, 16
        %v1418 = vrot.slane %v1416, 5
        %v1419 = vsel %vm280, %v1414, %v1418
        %v1426 = vrot.slane %v218, 5
        %v1427 = vrot.slane %v1426, 4
        %v1428 = vrot.slane %v219, 5
        %v1429 = vsel %vm1147, %v1427, %v1428
        %v1430 = vrot.slane %v1428, 4
        %v1431 = vrot.slane %v220, 5
        %v1432 = vsel %vm1147, %v1430, %v1431
        %v1433 = vrot.slane %v272, 5
        %v1434 = vrot.slane %v1433, 4
        %v1435 = vrot.slane %v273, 5
        %v1436 = vsel %vm1147, %v1434, %v1435
        %v1437 = vrot.slane %v1435, 4
        %v1438 = vrot.slane %v274, 5
        %v1439 = vsel %vm1147, %v1437, %v1438
        %v1441 = vshrl.u32 %v221, 16
        %v1443 = vrot.slane %v1441, 4
        %v1444 = vshll.u32 %v221, 16
        %v1446 = vrot.slane %v1444, 5
        %v1447 = vor.u32 %v1443, %v1446
        %v1448 = vrot.slane %v1447, 4
        %v1450 = vshll.u32 %v222, 16
        %v1452 = vrot.slane %v1450, 5
        %v1453 = vsel %vm280, %v1448, %v1452
        %v1454 = vshrl.u32 %v222, 16
        %v1456 = vrot.slane %v1454, 4
        %v1457 = vor.u32 %v1456, %v1452
        %v1458 = vrot.slane %v1457, 4
        %v1460 = vshll.u32 %v223, 16
        %v1462 = vrot.slane %v1460, 5
        %v1463 = vsel %vm280, %v1458, %v1462
        %v1465 = vshrl.u32 %v275, 16
        %v1467 = vrot.slane %v1465, 4
        %v1468 = vshll.u32 %v275, 16
        %v1470 = vrot.slane %v1468, 5
        %v1471 = vor.u32 %v1467, %v1470
        %v1472 = vrot.slane %v1471, 4
        %v1474 = vshll.u32 %v276, 16
        %v1476 = vrot.slane %v1474, 5
        %v1477 = vsel %vm280, %v1472, %v1476
        %v1478 = vshrl.u32 %v276, 16
        %v1480 = vrot.slane %v1478, 4
        %v1481 = vor.u32 %v1480, %v1476
        %v1482 = vrot.slane %v1481, 4
        %v1484 = vshll.u32 %v277, 16
        %v1486 = vrot.slane %v1484, 5
        %v1487 = vsel %vm280, %v1482, %v1486
        %v1494 = vrot.slane %v221, 5
        %v1495 = vrot.slane %v1494, 4
        %v1496 = vrot.slane %v222, 5
        %v1497 = vsel %vm1147, %v1495, %v1496
        %v1498 = vrot.slane %v1496, 4
        %v1499 = vrot.slane %v223, 5
        %v1500 = vsel %vm1147, %v1498, %v1499
        %v1501 = vrot.slane %v275, 5
        %v1502 = vrot.slane %v1501, 4
        %v1503 = vrot.slane %v276, 5
        %v1504 = vsel %vm1147, %v1502, %v1503
        %v1505 = vrot.slane %v1503, 4
        %v1506 = vrot.slane %v277, 5
        %v1507 = vsel %vm1147, %v1505, %v1506
        %v1508 = vunpack.c.l.b16 %v170
        %v1509 = vunpack.c.l.b16 %v171
        %v1510 = vunpack.c.l.b16 %v173
        %v1511 = vunpack.c.l.b16 %v174
        %v1512 = vunpack.c.l.b16 %v176
        %v1513 = vunpack.c.l.b16 %v177
        %v1514 = vunpack.c.l.b16 %v179
        %v1515 = vunpack.c.l.b16 %v180
        %v1516 = vunpack.c.l.b16 %v182
        %v1517 = vunpack.c.l.b16 %v183
        %v1518 = vunpack.c.l.b16 %v185
        %v1519 = vunpack.c.l.b16 %v186
        %v1520 = vunpack.c.l.b16 %v188
        %v1521 = vunpack.c.l.b16 %v189
        %v1522 = vunpack.c.l.b16 %v191
        %v1523 = vunpack.c.l.b16 %v192
        %v1524 = vunpack.c.l.b16 %v194
        %v1525 = vunpack.c.l.b16 %v195
        %v1526 = vunpack.c.l.b16 %v197
        %v1527 = vunpack.c.l.b16 %v198
        %v1528 = vunpack.c.l.b16 %v200
        %v1529 = vunpack.c.l.b16 %v201
        %v1530 = vunpack.c.l.b16 %v203
        %v1531 = vunpack.c.l.b16 %v204
        %v1532 = vunpack.c.l.b16 %v206
        %v1533 = vunpack.c.l.b16 %v207
        %v1534 = vunpack.c.l.b16 %v209
        %v1535 = vunpack.c.l.b16 %v210
        %v1536 = vunpack.c.l.b16 %v212
        %v1537 = vunpack.c.l.b16 %v213
        %v1538 = vunpack.c.l.b16 %v215
        %v1539 = vunpack.c.l.b16 %v216
        %v1540 = vunpack.c.l.b16 %v224
        %v1541 = vunpack.c.l.b16 %v225
        %v1542 = vunpack.c.l.b16 %v227
        %v1543 = vunpack.c.l.b16 %v228
        %v1544 = vunpack.c.l.b16 %v230
        %v1545 = vunpack.c.l.b16 %v231
        %v1546 = vunpack.c.l.b16 %v233
        %v1547 = vunpack.c.l.b16 %v234
        %v1548 = vunpack.c.l.b16 %v236
        %v1549 = vunpack.c.l.b16 %v237
        %v1550 = vunpack.c.l.b16 %v239
        %v1551 = vunpack.c.l.b16 %v240
        %v1552 = vunpack.c.l.b16 %v242
        %v1553 = vunpack.c.l.b16 %v243
        %v1554 = vunpack.c.l.b16 %v245
        %v1555 = vunpack.c.l.b16 %v246
        %v1556 = vunpack.c.l.b16 %v248
        %v1557 = vunpack.c.l.b16 %v249
        %v1558 = vunpack.c.l.b16 %v251
        %v1559 = vunpack.c.l.b16 %v252
        %v1560 = vunpack.c.l.b16 %v254
        %v1561 = vunpack.c.l.b16 %v255
        %v1562 = vunpack.c.l.b16 %v257
        %v1563 = vunpack.c.l.b16 %v258
        %v1564 = vunpack.c.l.b16 %v260
        %v1565 = vunpack.c.l.b16 %v261
        %v1566 = vunpack.c.l.b16 %v263
        %v1567 = vunpack.c.l.b16 %v264
        %v1568 = vunpack.c.l.b16 %v266
        %v1569 = vunpack.c.l.b16 %v267
        %v1570 = vunpack.c.l.b16 %v269
        %v1571 = vunpack.c.l.b16 %v270
        %v1572 = vpack.c.b16 %v1509, %v1508
        %v1573 = vpack.c.b16 %v1511, %v1510
        %v1574 = vpack.c.b16 %v1513, %v1512
        %v1575 = vpack.c.b16 %v1515, %v1514
        %v1576 = vpack.c.b16 %v1517, %v1516
        %v1577 = vpack.c.b16 %v1519, %v1518
        %v1578 = vpack.c.b16 %v1521, %v1520
        %v1579 = vpack.c.b16 %v1523, %v1522
        %v1580 = vpack.c.b16 %v1525, %v1524
        %v1581 = vpack.c.b16 %v1527, %v1526
        %v1582 = vpack.c.b16 %v1529, %v1528
        %v1583 = vpack.c.b16 %v1531, %v1530
        %v1584 = vpack.c.b16 %v1533, %v1532
        %v1585 = vpack.c.b16 %v1535, %v1534
        %v1586 = vpack.c.b16 %v1537, %v1536
        %v1587 = vpack.c.b16 %v1539, %v1538
        %v1588 = vpack.c.b16 %v1541, %v1540
        %v1589 = vpack.c.b16 %v1543, %v1542
        %v1590 = vpack.c.b16 %v1545, %v1544
        %v1591 = vpack.c.b16 %v1547, %v1546
        %v1592 = vpack.c.b16 %v1549, %v1548
        %v1593 = vpack.c.b16 %v1551, %v1550
        %v1594 = vpack.c.b16 %v1553, %v1552
        %v1595 = vpack.c.b16 %v1555, %v1554
        %v1596 = vpack.c.b16 %v1557, %v1556
        %v1597 = vpack.c.b16 %v1559, %v1558
        %v1598 = vpack.c.b16 %v1561, %v1560
        %v1599 = vpack.c.b16 %v1563, %v1562
        %v1600 = vpack.c.b16 %v1565, %v1564
        %v1601 = vpack.c.b16 %v1567, %v1566
        %v1602 = vpack.c.b16 %v1569, %v1568
        %v1603 = vpack.c.b16 %v1571, %v1570
        %v1604 = vunpack.c.l.b16 %v294
        %v1605 = vunpack.c.l.b16 %v304
        %v1606 = vunpack.c.l.b16 %v318
        %v1607 = vunpack.c.l.b16 %v328
        %v1608 = vunpack.c.l.b16 %v342
        %v1609 = vunpack.c.l.b16 %v352
        %v1610 = vunpack.c.l.b16 %v366
        %v1611 = vunpack.c.l.b16 %v376
        %v1612 = vunpack.c.l.b16 %v390
        %v1613 = vunpack.c.l.b16 %v400
        %v1614 = vunpack.c.l.b16 %v414
        %v1615 = vunpack.c.l.b16 %v424
        %v1616 = vunpack.c.l.b16 %v438
        %v1617 = vunpack.c.l.b16 %v448
        %v1618 = vunpack.c.l.b16 %v462
        %v1619 = vunpack.c.l.b16 %v472
        %v1620 = vunpack.c.l.b16 %v486
        %v1621 = vunpack.c.l.b16 %v496
        %v1622 = vunpack.c.l.b16 %v510
        %v1623 = vunpack.c.l.b16 %v520
        %v1624 = vunpack.c.l.b16 %v534
        %v1625 = vunpack.c.l.b16 %v544
        %v1626 = vunpack.c.l.b16 %v558
        %v1627 = vunpack.c.l.b16 %v568
        %v1628 = vunpack.c.l.b16 %v582
        %v1629 = vunpack.c.l.b16 %v592
        %v1630 = vunpack.c.l.b16 %v606
        %v1631 = vunpack.c.l.b16 %v616
        %v1632 = vunpack.c.l.b16 %v630
        %v1633 = vunpack.c.l.b16 %v640
        %v1634 = vunpack.c.l.b16 %v654
        %v1635 = vunpack.c.l.b16 %v664
        %v1636 = vunpack.c.l.b16 %v678
        %v1637 = vunpack.c.l.b16 %v688
        %v1638 = vunpack.c.l.b16 %v702
        %v1639 = vunpack.c.l.b16 %v712
        %v1640 = vunpack.c.l.b16 %v726
        %v1641 = vunpack.c.l.b16 %v736
        %v1642 = vunpack.c.l.b16 %v750
        %v1643 = vunpack.c.l.b16 %v760
        %v1644 = vunpack.c.l.b16 %v774
        %v1645 = vunpack.c.l.b16 %v784
        %v1646 = vunpack.c.l.b16 %v798
        %v1647 = vunpack.c.l.b16 %v808
        %v1648 = vunpack.c.l.b16 %v822
        %v1649 = vunpack.c.l.b16 %v832
        %v1650 = vunpack.c.l.b16 %v846
        %v1651 = vunpack.c.l.b16 %v856
        %v1652 = vunpack.c.l.b16 %v870
        %v1653 = vunpack.c.l.b16 %v880
        %v1654 = vunpack.c.l.b16 %v894
        %v1655 = vunpack.c.l.b16 %v904
        %v1656 = vunpack.c.l.b16 %v918
        %v1657 = vunpack.c.l.b16 %v928
        %v1658 = vunpack.c.l.b16 %v942
        %v1659 = vunpack.c.l.b16 %v952
        %v1660 = vunpack.c.l.b16 %v966
        %v1661 = vunpack.c.l.b16 %v976
        %v1662 = vunpack.c.l.b16 %v990
        %v1663 = vunpack.c.l.b16 %v1000
        %v1664 = vunpack.c.l.b16 %v1014
        %v1665 = vunpack.c.l.b16 %v1024
        %v1666 = vunpack.c.l.b16 %v1038
        %v1667 = vunpack.c.l.b16 %v1048
        %v1668 = vpack.c.b16 %v1605, %v1604
        %v1669 = vpack.c.b16 %v1607, %v1606
        %v1670 = vpack.c.b16 %v1609, %v1608
        %v1671 = vpack.c.b16 %v1611, %v1610
        %v1672 = vpack.c.b16 %v1613, %v1612
        %v1673 = vpack.c.b16 %v1615, %v1614
        %v1674 = vpack.c.b16 %v1617, %v1616
        %v1675 = vpack.c.b16 %v1619, %v1618
        %v1676 = vpack.c.b16 %v1621, %v1620
        %v1677 = vpack.c.b16 %v1623, %v1622
        %v1678 = vpack.c.b16 %v1625, %v1624
        %v1679 = vpack.c.b16 %v1627, %v1626
        %v1680 = vpack.c.b16 %v1629, %v1628
        %v1681 = vpack.c.b16 %v1631, %v1630
        %v1682 = vpack.c.b16 %v1633, %v1632
        %v1683 = vpack.c.b16 %v1635, %v1634
        %v1684 = vpack.c.b16 %v1637, %v1636
        %v1685 = vpack.c.b16 %v1639, %v1638
        %v1686 = vpack.c.b16 %v1641, %v1640
        %v1687 = vpack.c.b16 %v1643, %v1642
        %v1688 = vpack.c.b16 %v1645, %v1644
        %v1689 = vpack.c.b16 %v1647, %v1646
        %v1690 = vpack.c.b16 %v1649, %v1648
        %v1691 = vpack.c.b16 %v1651, %v1650
        %v1692 = vpack.c.b16 %v1653, %v1652
        %v1693 = vpack.c.b16 %v1655, %v1654
        %v1694 = vpack.c.b16 %v1657, %v1656
        %v1695 = vpack.c.b16 %v1659, %v1658
        %v1696 = vpack.c.b16 %v1661, %v1660
        %v1697 = vpack.c.b16 %v1663, %v1662
        %v1698 = vpack.c.b16 %v1665, %v1664
        %v1699 = vpack.c.b16 %v1667, %v1666
        %1700 = vrot.lane.b32.xlu0 %v1668, 4
        %v1701 = vpop.permute.xlu0 %1700
        %1702 = vrot.lane.b32.xlu0 %v1669, 4
        %v1703 = vpop.permute.xlu0 %1702
        %1704 = vrot.lane.b32.xlu0 %v1670, 4
        %v1705 = vpop.permute.xlu0 %1704
        %1706 = vrot.lane.b32.xlu0 %v1671, 4
        %v1707 = vpop.permute.xlu0 %1706
        %1708 = vrot.lane.b32.xlu0 %v1672, 4
        %v1709 = vpop.permute.xlu0 %1708
        %1710 = vrot.lane.b32.xlu0 %v1673, 4
        %v1711 = vpop.permute.xlu0 %1710
        %1712 = vrot.lane.b32.xlu0 %v1674, 4
        %v1713 = vpop.permute.xlu0 %1712
        %1714 = vrot.lane.b32.xlu0 %v1675, 4
        %v1715 = vpop.permute.xlu0 %1714
        %1716 = vrot.lane.b32.xlu0 %v1676, 4
        %v1717 = vpop.permute.xlu0 %1716
        %1718 = vrot.lane.b32.xlu0 %v1677, 4
        %v1719 = vpop.permute.xlu0 %1718
        %1720 = vrot.lane.b32.xlu0 %v1678, 4
        %v1721 = vpop.permute.xlu0 %1720
        %1722 = vrot.lane.b32.xlu0 %v1679, 4
        %v1723 = vpop.permute.xlu0 %1722
        %1724 = vrot.lane.b32.xlu0 %v1680, 4
        %v1725 = vpop.permute.xlu0 %1724
        %1726 = vrot.lane.b32.xlu0 %v1681, 4
        %v1727 = vpop.permute.xlu0 %1726
        %1728 = vrot.lane.b32.xlu0 %v1682, 4
        %v1729 = vpop.permute.xlu0 %1728
        %1730 = vrot.lane.b32.xlu0 %v1683, 4
        %v1731 = vpop.permute.xlu0 %1730
        %1732 = vrot.lane.b32.xlu0 %v1684, 4
        %v1733 = vpop.permute.xlu0 %1732
        %1734 = vrot.lane.b32.xlu0 %v1685, 4
        %v1735 = vpop.permute.xlu0 %1734
        %1736 = vrot.lane.b32.xlu0 %v1686, 4
        %v1737 = vpop.permute.xlu0 %1736
        %1738 = vrot.lane.b32.xlu0 %v1687, 4
        %v1739 = vpop.permute.xlu0 %1738
        %1740 = vrot.lane.b32.xlu0 %v1688, 4
        %v1741 = vpop.permute.xlu0 %1740
        %1742 = vrot.lane.b32.xlu0 %v1689, 4
        %v1743 = vpop.permute.xlu0 %1742
        %1744 = vrot.lane.b32.xlu0 %v1690, 4
        %v1745 = vpop.permute.xlu0 %1744
        %1746 = vrot.lane.b32.xlu0 %v1691, 4
        %v1747 = vpop.permute.xlu0 %1746
        %1748 = vrot.lane.b32.xlu0 %v1692, 4
        %v1749 = vpop.permute.xlu0 %1748
        %1750 = vrot.lane.b32.xlu0 %v1693, 4
        %v1751 = vpop.permute.xlu0 %1750
        %1752 = vrot.lane.b32.xlu0 %v1694, 4
        %v1753 = vpop.permute.xlu0 %1752
        %1754 = vrot.lane.b32.xlu0 %v1695, 4
        %v1755 = vpop.permute.xlu0 %1754
        %1756 = vrot.lane.b32.xlu0 %v1696, 4
        %v1757 = vpop.permute.xlu0 %1756
        %1758 = vrot.lane.b32.xlu0 %v1697, 4
        %v1759 = vpop.permute.xlu0 %1758
        %1760 = vrot.lane.b32.xlu0 %v1698, 4
        %v1761 = vpop.permute.xlu0 %1760
        %1762 = vrot.lane.b32.xlu0 %v1699, 4
        %v1763 = vpop.permute.xlu0 %1762
        %v1764 = vunpack.c.l.b16 %v1151
        %v1765 = vunpack.c.l.b16 %v1154
        %v1766 = vunpack.c.l.b16 %v1158
        %v1767 = vunpack.c.l.b16 %v1161
        %v1768 = vunpack.c.l.b16 %v1165
        %v1769 = vunpack.c.l.b16 %v1168
        %v1770 = vunpack.c.l.b16 %v1172
        %v1771 = vunpack.c.l.b16 %v1175
        %v1772 = vunpack.c.l.b16 %v1179
        %v1773 = vunpack.c.l.b16 %v1182
        %v1774 = vunpack.c.l.b16 %v1186
        %v1775 = vunpack.c.l.b16 %v1189
        %v1776 = vunpack.c.l.b16 %v1193
        %v1777 = vunpack.c.l.b16 %v1196
        %v1778 = vunpack.c.l.b16 %v1200
        %v1779 = vunpack.c.l.b16 %v1203
        %v1780 = vunpack.c.l.b16 %v1207
        %v1781 = vunpack.c.l.b16 %v1210
        %v1782 = vunpack.c.l.b16 %v1214
        %v1783 = vunpack.c.l.b16 %v1217
        %v1784 = vunpack.c.l.b16 %v1221
        %v1785 = vunpack.c.l.b16 %v1224
        %v1786 = vunpack.c.l.b16 %v1228
        %v1787 = vunpack.c.l.b16 %v1231
        %v1788 = vunpack.c.l.b16 %v1235
        %v1789 = vunpack.c.l.b16 %v1238
        %v1790 = vunpack.c.l.b16 %v1242
        %v1791 = vunpack.c.l.b16 %v1245
        %v1792 = vunpack.c.l.b16 %v1249
        %v1793 = vunpack.c.l.b16 %v1252
        %v1794 = vunpack.c.l.b16 %v1256
        %v1795 = vunpack.c.l.b16 %v1259
        %v1796 = vunpack.c.l.b16 %v1263
        %v1797 = vunpack.c.l.b16 %v1266
        %v1798 = vunpack.c.l.b16 %v1270
        %v1799 = vunpack.c.l.b16 %v1273
        %v1800 = vunpack.c.l.b16 %v1277
        %v1801 = vunpack.c.l.b16 %v1280
        %v1802 = vunpack.c.l.b16 %v1284
        %v1803 = vunpack.c.l.b16 %v1287
        %v1804 = vunpack.c.l.b16 %v1291
        %v1805 = vunpack.c.l.b16 %v1294
        %v1806 = vunpack.c.l.b16 %v1298
        %v1807 = vunpack.c.l.b16 %v1301
        %v1808 = vunpack.c.l.b16 %v1305
        %v1809 = vunpack.c.l.b16 %v1308
        %v1810 = vunpack.c.l.b16 %v1312
        %v1811 = vunpack.c.l.b16 %v1315
        %v1812 = vunpack.c.l.b16 %v1319
        %v1813 = vunpack.c.l.b16 %v1322
        %v1814 = vunpack.c.l.b16 %v1326
        %v1815 = vunpack.c.l.b16 %v1329
        %v1816 = vunpack.c.l.b16 %v1333
        %v1817 = vunpack.c.l.b16 %v1336
        %v1818 = vunpack.c.l.b16 %v1340
        %v1819 = vunpack.c.l.b16 %v1343
        %v1820 = vunpack.c.l.b16 %v1347
        %v1821 = vunpack.c.l.b16 %v1350
        %v1822 = vunpack.c.l.b16 %v1354
        %v1823 = vunpack.c.l.b16 %v1357
        %v1824 = vunpack.c.l.b16 %v1361
        %v1825 = vunpack.c.l.b16 %v1364
        %v1826 = vunpack.c.l.b16 %v1368
        %v1827 = vunpack.c.l.b16 %v1371
        %v1828 = vpack.c.b16 %v1765, %v1764
        %v1829 = vpack.c.b16 %v1767, %v1766
        %v1830 = vpack.c.b16 %v1769, %v1768
        %v1831 = vpack.c.b16 %v1771, %v1770
        %v1832 = vpack.c.b16 %v1773, %v1772
        %v1833 = vpack.c.b16 %v1775, %v1774
        %v1834 = vpack.c.b16 %v1777, %v1776
        %v1835 = vpack.c.b16 %v1779, %v1778
        %v1836 = vpack.c.b16 %v1781, %v1780
        %v1837 = vpack.c.b16 %v1783, %v1782
        %v1838 = vpack.c.b16 %v1785, %v1784
        %v1839 = vpack.c.b16 %v1787, %v1786
        %v1840 = vpack.c.b16 %v1789, %v1788
        %v1841 = vpack.c.b16 %v1791, %v1790
        %v1842 = vpack.c.b16 %v1793, %v1792
        %v1843 = vpack.c.b16 %v1795, %v1794
        %v1844 = vpack.c.b16 %v1797, %v1796
        %v1845 = vpack.c.b16 %v1799, %v1798
        %v1846 = vpack.c.b16 %v1801, %v1800
        %v1847 = vpack.c.b16 %v1803, %v1802
        %v1848 = vpack.c.b16 %v1805, %v1804
        %v1849 = vpack.c.b16 %v1807, %v1806
        %v1850 = vpack.c.b16 %v1809, %v1808
        %v1851 = vpack.c.b16 %v1811, %v1810
        %v1852 = vpack.c.b16 %v1813, %v1812
        %v1853 = vpack.c.b16 %v1815, %v1814
        %v1854 = vpack.c.b16 %v1817, %v1816
        %v1855 = vpack.c.b16 %v1819, %v1818
        %v1856 = vpack.c.b16 %v1821, %v1820
        %v1857 = vpack.c.b16 %v1823, %v1822
        %v1858 = vpack.c.b16 %v1825, %v1824
        %v1859 = vpack.c.b16 %v1827, %v1826
        %1860 = vrot.lane.b32.xlu0 %v1828, 8
        %v1861 = vpop.permute.xlu0 %1860
        %1862 = vrot.lane.b32.xlu0 %v1829, 8
        %v1863 = vpop.permute.xlu0 %1862
        %1864 = vrot.lane.b32.xlu0 %v1830, 8
        %v1865 = vpop.permute.xlu0 %1864
        %1866 = vrot.lane.b32.xlu0 %v1831, 8
        %v1867 = vpop.permute.xlu0 %1866
        %1868 = vrot.lane.b32.xlu0 %v1832, 8
        %v1869 = vpop.permute.xlu0 %1868
        %1870 = vrot.lane.b32.xlu0 %v1833, 8
        %v1871 = vpop.permute.xlu0 %1870
        %1872 = vrot.lane.b32.xlu0 %v1834, 8
        %v1873 = vpop.permute.xlu0 %1872
        %1874 = vrot.lane.b32.xlu0 %v1835, 8
        %v1875 = vpop.permute.xlu0 %1874
        %1876 = vrot.lane.b32.xlu0 %v1836, 8
        %v1877 = vpop.permute.xlu0 %1876
        %1878 = vrot.lane.b32.xlu0 %v1837, 8
        %v1879 = vpop.permute.xlu0 %1878
        %1880 = vrot.lane.b32.xlu0 %v1838, 8
        %v1881 = vpop.permute.xlu0 %1880
        %1882 = vrot.lane.b32.xlu0 %v1839, 8
        %v1883 = vpop.permute.xlu0 %1882
        %1884 = vrot.lane.b32.xlu0 %v1840, 8
        %v1885 = vpop.permute.xlu0 %1884
        %1886 = vrot.lane.b32.xlu0 %v1841, 8
        %v1887 = vpop.permute.xlu0 %1886
        %1888 = vrot.lane.b32.xlu0 %v1842, 8
        %v1889 = vpop.permute.xlu0 %1888
        %1890 = vrot.lane.b32.xlu0 %v1843, 8
        %v1891 = vpop.permute.xlu0 %1890
        %1892 = vrot.lane.b32.xlu0 %v1844, 8
        %v1893 = vpop.permute.xlu0 %1892
        %1894 = vrot.lane.b32.xlu0 %v1845, 8
        %v1895 = vpop.permute.xlu0 %1894
        %1896 = vrot.lane.b32.xlu0 %v1846, 8
        %v1897 = vpop.permute.xlu0 %1896
        %1898 = vrot.lane.b32.xlu0 %v1847, 8
        %v1899 = vpop.permute.xlu0 %1898
        %1900 = vrot.lane.b32.xlu0 %v1848, 8
        %v1901 = vpop.permute.xlu0 %1900
        %1902 = vrot.lane.b32.xlu0 %v1849, 8
        %v1903 = vpop.permute.xlu0 %1902
        %1904 = vrot.lane.b32.xlu0 %v1850, 8
        %v1905 = vpop.permute.xlu0 %1904
        %1906 = vrot.lane.b32.xlu0 %v1851, 8
        %v1907 = vpop.permute.xlu0 %1906
        %1908 = vrot.lane.b32.xlu0 %v1852, 8
        %v1909 = vpop.permute.xlu0 %1908
        %1910 = vrot.lane.b32.xlu0 %v1853, 8
        %v1911 = vpop.permute.xlu0 %1910
        %1912 = vrot.lane.b32.xlu0 %v1854, 8
        %v1913 = vpop.permute.xlu0 %1912
        %1914 = vrot.lane.b32.xlu0 %v1855, 8
        %v1915 = vpop.permute.xlu0 %1914
        %1916 = vrot.lane.b32.xlu0 %v1856, 8
        %v1917 = vpop.permute.xlu0 %1916
        %1918 = vrot.lane.b32.xlu0 %v1857, 8
        %v1919 = vpop.permute.xlu0 %1918
        %1920 = vrot.lane.b32.xlu0 %v1858, 8
        %v1921 = vpop.permute.xlu0 %1920
        %1922 = vrot.lane.b32.xlu0 %v1859, 8
        %v1923 = vpop.permute.xlu0 %1922
        %v1924 = vunpack.c.l.b16 %v218
        %v1925 = vunpack.c.l.b16 %v219
        %v1926 = vunpack.c.l.b16 %v272
        %v1927 = vunpack.c.l.b16 %v273
        %v1928 = vpack.c.b16 %v1925, %v1924
        %v1929 = vpack.c.b16 %v1927, %v1926
        %1930 = vrot.lane.b32.xlu0 %v1573, 12
        %v1931 = vpop.permute.xlu0 %1930
        %1932 = vrot.lane.b32.xlu0 %v1574, 12
        %v1933 = vpop.permute.xlu0 %1932
        %1934 = vrot.lane.b32.xlu0 %v1575, 12
        %v1935 = vpop.permute.xlu0 %1934
        %1936 = vrot.lane.b32.xlu0 %v1576, 12
        %v1937 = vpop.permute.xlu0 %1936
        %1938 = vrot.lane.b32.xlu0 %v1577, 12
        %v1939 = vpop.permute.xlu0 %1938
        %1940 = vrot.lane.b32.xlu0 %v1578, 12
        %v1941 = vpop.permute.xlu0 %1940
        %1942 = vrot.lane.b32.xlu0 %v1579, 12
        %v1943 = vpop.permute.xlu0 %1942
        %1944 = vrot.lane.b32.xlu0 %v1580, 12
        %v1945 = vpop.permute.xlu0 %1944
        %1946 = vrot.lane.b32.xlu0 %v1581, 12
        %v1947 = vpop.permute.xlu0 %1946
        %1948 = vrot.lane.b32.xlu0 %v1582, 12
        %v1949 = vpop.permute.xlu0 %1948
        %1950 = vrot.lane.b32.xlu0 %v1583, 12
        %v1951 = vpop.permute.xlu0 %1950
        %1952 = vrot.lane.b32.xlu0 %v1584, 12
        %v1953 = vpop.permute.xlu0 %1952
        %1954 = vrot.lane.b32.xlu0 %v1585, 12
        %v1955 = vpop.permute.xlu0 %1954
        %1956 = vrot.lane.b32.xlu0 %v1586, 12
        %v1957 = vpop.permute.xlu0 %1956
        %1958 = vrot.lane.b32.xlu0 %v1587, 12
        %v1959 = vpop.permute.xlu0 %1958
        %1960 = vrot.lane.b32.xlu0 %v1928, 12
        %v1961 = vpop.permute.xlu0 %1960
        %1962 = vrot.lane.b32.xlu0 %v1589, 12
        %v1963 = vpop.permute.xlu0 %1962
        %1964 = vrot.lane.b32.xlu0 %v1590, 12
        %v1965 = vpop.permute.xlu0 %1964
        %1966 = vrot.lane.b32.xlu0 %v1591, 12
        %v1967 = vpop.permute.xlu0 %1966
        %1968 = vrot.lane.b32.xlu0 %v1592, 12
        %v1969 = vpop.permute.xlu0 %1968
        %1970 = vrot.lane.b32.xlu0 %v1593, 12
        %v1971 = vpop.permute.xlu0 %1970
        %1972 = vrot.lane.b32.xlu0 %v1594, 12
        %v1973 = vpop.permute.xlu0 %1972
        %1974 = vrot.lane.b32.xlu0 %v1595, 12
        %v1975 = vpop.permute.xlu0 %1974
        %1976 = vrot.lane.b32.xlu0 %v1596, 12
        %v1977 = vpop.permute.xlu0 %1976
        %1978 = vrot.lane.b32.xlu0 %v1597, 12
        %v1979 = vpop.permute.xlu0 %1978
        %1980 = vrot.lane.b32.xlu0 %v1598, 12
        %v1981 = vpop.permute.xlu0 %1980
        %1982 = vrot.lane.b32.xlu0 %v1599, 12
        %v1983 = vpop.permute.xlu0 %1982
        %1984 = vrot.lane.b32.xlu0 %v1600, 12
        %v1985 = vpop.permute.xlu0 %1984
        %1986 = vrot.lane.b32.xlu0 %v1601, 12
        %v1987 = vpop.permute.xlu0 %1986
        %1988 = vrot.lane.b32.xlu0 %v1602, 12
        %v1989 = vpop.permute.xlu0 %1988
        %1990 = vrot.lane.b32.xlu0 %v1603, 12
        %v1991 = vpop.permute.xlu0 %1990
        %1992 = vrot.lane.b32.xlu0 %v1929, 12
        %v1993 = vpop.permute.xlu0 %1992
        %v1994 = vunpack.c.l.b16 %v1385
        %v1995 = vunpack.c.l.b16 %v1395
        %v1996 = vunpack.c.l.b16 %v1409
        %v1997 = vunpack.c.l.b16 %v1419
        %v1998 = vpack.c.b16 %v1995, %v1994
        %v1999 = vpack.c.b16 %v1997, %v1996
        %2000 = vrot.lane.b32.xlu0 %v1669, 16
        %v2001 = vpop.permute.xlu0 %2000
        %2002 = vrot.lane.b32.xlu0 %v1670, 16
        %v2003 = vpop.permute.xlu0 %2002
        %2004 = vrot.lane.b32.xlu0 %v1671, 16
        %v2005 = vpop.permute.xlu0 %2004
        %2006 = vrot.lane.b32.xlu0 %v1672, 16
        %v2007 = vpop.permute.xlu0 %2006
        %2008 = vrot.lane.b32.xlu0 %v1673, 16
        %v2009 = vpop.permute.xlu0 %2008
        %2010 = vrot.lane.b32.xlu0 %v1674, 16
        %v2011 = vpop.permute.xlu0 %2010
        %2012 = vrot.lane.b32.xlu0 %v1675, 16
        %v2013 = vpop.permute.xlu0 %2012
        %2014 = vrot.lane.b32.xlu0 %v1676, 16
        %v2015 = vpop.permute.xlu0 %2014
        %2016 = vrot.lane.b32.xlu0 %v1677, 16
        %v2017 = vpop.permute.xlu0 %2016
        %2018 = vrot.lane.b32.xlu0 %v1678, 16
        %v2019 = vpop.permute.xlu0 %2018
        %2020 = vrot.lane.b32.xlu0 %v1679, 16
        %v2021 = vpop.permute.xlu0 %2020
        %2022 = vrot.lane.b32.xlu0 %v1680, 16
        %v2023 = vpop.permute.xlu0 %2022
        %2024 = vrot.lane.b32.xlu0 %v1681, 16
        %v2025 = vpop.permute.xlu0 %2024
        %2026 = vrot.lane.b32.xlu0 %v1682, 16
        %v2027 = vpop.permute.xlu0 %2026
        %2028 = vrot.lane.b32.xlu0 %v1683, 16
        %v2029 = vpop.permute.xlu0 %2028
        %2030 = vrot.lane.b32.xlu0 %v1998, 16
        %v2031 = vpop.permute.xlu0 %2030
        %2032 = vrot.lane.b32.xlu0 %v1685, 16
        %v2033 = vpop.permute.xlu0 %2032
        %2034 = vrot.lane.b32.xlu0 %v1686, 16
        %v2035 = vpop.permute.xlu0 %2034
        %2036 = vrot.lane.b32.xlu0 %v1687, 16
        %v2037 = vpop.permute.xlu0 %2036
        %2038 = vrot.lane.b32.xlu0 %v1688, 16
        %v2039 = vpop.permute.xlu0 %2038
        %2040 = vrot.lane.b32.xlu0 %v1689, 16
        %v2041 = vpop.permute.xlu0 %2040
        %2042 = vrot.lane.b32.xlu0 %v1690, 16
        %v2043 = vpop.permute.xlu0 %2042
        %2044 = vrot.lane.b32.xlu0 %v1691, 16
        %v2045 = vpop.permute.xlu0 %2044
        %2046 = vrot.lane.b32.xlu0 %v1692, 16
        %v2047 = vpop.permute.xlu0 %2046
        %2048 = vrot.lane.b32.xlu0 %v1693, 16
        %v2049 = vpop.permute.xlu0 %2048
        %2050 = vrot.lane.b32.xlu0 %v1694, 16
        %v2051 = vpop.permute.xlu0 %2050
        %2052 = vrot.lane.b32.xlu0 %v1695, 16
        %v2053 = vpop.permute.xlu0 %2052
        %2054 = vrot.lane.b32.xlu0 %v1696, 16
        %v2055 = vpop.permute.xlu0 %2054
        %2056 = vrot.lane.b32.xlu0 %v1697, 16
        %v2057 = vpop.permute.xlu0 %2056
        %2058 = vrot.lane.b32.xlu0 %v1698, 16
        %v2059 = vpop.permute.xlu0 %2058
        %2060 = vrot.lane.b32.xlu0 %v1699, 16
        %v2061 = vpop.permute.xlu0 %2060
        %2062 = vrot.lane.b32.xlu0 %v1999, 16
        %v2063 = vpop.permute.xlu0 %2062
        %v2064 = vunpack.c.l.b16 %v1429
        %v2065 = vunpack.c.l.b16 %v1432
        %v2066 = vunpack.c.l.b16 %v1436
        %v2067 = vunpack.c.l.b16 %v1439
        %v2068 = vpack.c.b16 %v2065, %v2064
        %v2069 = vpack.c.b16 %v2067, %v2066
        %2070 = vrot.lane.b32.xlu0 %v1829, 20
        %v2071 = vpop.permute.xlu0 %2070
        %2072 = vrot.lane.b32.xlu0 %v1830, 20
        %v2073 = vpop.permute.xlu0 %2072
        %2074 = vrot.lane.b32.xlu0 %v1831, 20
        %v2075 = vpop.permute.xlu0 %2074
        %2076 = vrot.lane.b32.xlu0 %v1832, 20
        %v2077 = vpop.permute.xlu0 %2076
        %2078 = vrot.lane.b32.xlu0 %v1833, 20
        %v2079 = vpop.permute.xlu0 %2078
        %2080 = vrot.lane.b32.xlu0 %v1834, 20
        %v2081 = vpop.permute.xlu0 %2080
        %2082 = vrot.lane.b32.xlu0 %v1835, 20
        %v2083 = vpop.permute.xlu0 %2082
        %2084 = vrot.lane.b32.xlu0 %v1836, 20
        %v2085 = vpop.permute.xlu0 %2084
        %2086 = vrot.lane.b32.xlu0 %v1837, 20
        %v2087 = vpop.permute.xlu0 %2086
        %2088 = vrot.lane.b32.xlu0 %v1838, 20
        %v2089 = vpop.permute.xlu0 %2088
        %2090 = vrot.lane.b32.xlu0 %v1839, 20
        %v2091 = vpop.permute.xlu0 %2090
        %2092 = vrot.lane.b32.xlu0 %v1840, 20
        %v2093 = vpop.permute.xlu0 %2092
        %2094 = vrot.lane.b32.xlu0 %v1841, 20
        %v2095 = vpop.permute.xlu0 %2094
        %2096 = vrot.lane.b32.xlu0 %v1842, 20
        %v2097 = vpop.permute.xlu0 %2096
        %2098 = vrot.lane.b32.xlu0 %v1843, 20
        %v2099 = vpop.permute.xlu0 %2098
        %2100 = vrot.lane.b32.xlu0 %v2068, 20
        %v2101 = vpop.permute.xlu0 %2100
        %2102 = vrot.lane.b32.xlu0 %v1845, 20
        %v2103 = vpop.permute.xlu0 %2102
        %2104 = vrot.lane.b32.xlu0 %v1846, 20
        %v2105 = vpop.permute.xlu0 %2104
        %2106 = vrot.lane.b32.xlu0 %v1847, 20
        %v2107 = vpop.permute.xlu0 %2106
        %2108 = vrot.lane.b32.xlu0 %v1848, 20
        %v2109 = vpop.permute.xlu0 %2108
        %2110 = vrot.lane.b32.xlu0 %v1849, 20
        %v2111 = vpop.permute.xlu0 %2110
        %2112 = vrot.lane.b32.xlu0 %v1850, 20
        %v2113 = vpop.permute.xlu0 %2112
        %2114 = vrot.lane.b32.xlu0 %v1851, 20
        %v2115 = vpop.permute.xlu0 %2114
        %2116 = vrot.lane.b32.xlu0 %v1852, 20
        %v2117 = vpop.permute.xlu0 %2116
        %2118 = vrot.lane.b32.xlu0 %v1853, 20
        %v2119 = vpop.permute.xlu0 %2118
        %2120 = vrot.lane.b32.xlu0 %v1854, 20
        %v2121 = vpop.permute.xlu0 %2120
        %2122 = vrot.lane.b32.xlu0 %v1855, 20
        %v2123 = vpop.permute.xlu0 %2122
        %2124 = vrot.lane.b32.xlu0 %v1856, 20
        %v2125 = vpop.permute.xlu0 %2124
        %2126 = vrot.lane.b32.xlu0 %v1857, 20
        %v2127 = vpop.permute.xlu0 %2126
        %2128 = vrot.lane.b32.xlu0 %v1858, 20
        %v2129 = vpop.permute.xlu0 %2128
        %2130 = vrot.lane.b32.xlu0 %v1859, 20
        %v2131 = vpop.permute.xlu0 %2130
        %2132 = vrot.lane.b32.xlu0 %v2069, 20
        %v2133 = vpop.permute.xlu0 %2132
        %v2134 = vunpack.c.l.b16 %v221
        %v2135 = vunpack.c.l.b16 %v222
        %v2136 = vunpack.c.l.b16 %v275
        %v2137 = vunpack.c.l.b16 %v276
        %v2138 = vpack.c.b16 %v2135, %v2134
        %v2139 = vpack.c.b16 %v2137, %v2136
        %2140 = vrot.lane.b32.xlu0 %v1574, 24
        %v2141 = vpop.permute.xlu0 %2140
        %2142 = vrot.lane.b32.xlu0 %v1575, 24
        %v2143 = vpop.permute.xlu0 %2142
        %2144 = vrot.lane.b32.xlu0 %v1576, 24
        %v2145 = vpop.permute.xlu0 %2144
        %2146 = vrot.lane.b32.xlu0 %v1577, 24
        %v2147 = vpop.permute.xlu0 %2146
        %2148 = vrot.lane.b32.xlu0 %v1578, 24
        %v2149 = vpop.permute.xlu0 %2148
        %2150 = vrot.lane.b32.xlu0 %v1579, 24
        %v2151 = vpop.permute.xlu0 %2150
        %2152 = vrot.lane.b32.xlu0 %v1580, 24
        %v2153 = vpop.permute.xlu0 %2152
        %2154 = vrot.lane.b32.xlu0 %v1581, 24
        %v2155 = vpop.permute.xlu0 %2154
        %2156 = vrot.lane.b32.xlu0 %v1582, 24
        %v2157 = vpop.permute.xlu0 %2156
        %2158 = vrot.lane.b32.xlu0 %v1583, 24
        %v2159 = vpop.permute.xlu0 %2158
        %2160 = vrot.lane.b32.xlu0 %v1584, 24
        %v2161 = vpop.permute.xlu0 %2160
        %2162 = vrot.lane.b32.xlu0 %v1585, 24
        %v2163 = vpop.permute.xlu0 %2162
        %2164 = vrot.lane.b32.xlu0 %v1586, 24
        %v2165 = vpop.permute.xlu0 %2164
        %2166 = vrot.lane.b32.xlu0 %v1587, 24
        %v2167 = vpop.permute.xlu0 %2166
        %2168 = vrot.lane.b32.xlu0 %v1928, 24
        %v2169 = vpop.permute.xlu0 %2168
        %2170 = vrot.lane.b32.xlu0 %v2138, 24
        %v2171 = vpop.permute.xlu0 %2170
        %2172 = vrot.lane.b32.xlu0 %v1590, 24
        %v2173 = vpop.permute.xlu0 %2172
        %2174 = vrot.lane.b32.xlu0 %v1591, 24
        %v2175 = vpop.permute.xlu0 %2174
        %2176 = vrot.lane.b32.xlu0 %v1592, 24
        %v2177 = vpop.permute.xlu0 %2176
        %2178 = vrot.lane.b32.xlu0 %v1593, 24
        %v2179 = vpop.permute.xlu0 %2178
        %2180 = vrot.lane.b32.xlu0 %v1594, 24
        %v2181 = vpop.permute.xlu0 %2180
        %2182 = vrot.lane.b32.xlu0 %v1595, 24
        %v2183 = vpop.permute.xlu0 %2182
        %2184 = vrot.lane.b32.xlu0 %v1596, 24
        %v2185 = vpop.permute.xlu0 %2184
        %2186 = vrot.lane.b32.xlu0 %v1597, 24
        %v2187 = vpop.permute.xlu0 %2186
        %2188 = vrot.lane.b32.xlu0 %v1598, 24
        %v2189 = vpop.permute.xlu0 %2188
        %2190 = vrot.lane.b32.xlu0 %v1599, 24
        %v2191 = vpop.permute.xlu0 %2190
        %2192 = vrot.lane.b32.xlu0 %v1600, 24
        %v2193 = vpop.permute.xlu0 %2192
        %2194 = vrot.lane.b32.xlu0 %v1601, 24
        %v2195 = vpop.permute.xlu0 %2194
        %2196 = vrot.lane.b32.xlu0 %v1602, 24
        %v2197 = vpop.permute.xlu0 %2196
        %2198 = vrot.lane.b32.xlu0 %v1603, 24
        %v2199 = vpop.permute.xlu0 %2198
        %2200 = vrot.lane.b32.xlu0 %v1929, 24
        %v2201 = vpop.permute.xlu0 %2200
        %2202 = vrot.lane.b32.xlu0 %v2139, 24
        %v2203 = vpop.permute.xlu0 %2202
        %v2204 = vunpack.c.l.b16 %v1453
        %v2205 = vunpack.c.l.b16 %v1463
        %v2206 = vunpack.c.l.b16 %v1477
        %v2207 = vunpack.c.l.b16 %v1487
        %v2208 = vpack.c.b16 %v2205, %v2204
        %v2209 = vpack.c.b16 %v2207, %v2206
        %2210 = vrot.lane.b32.xlu0 %v1670, 28
        %v2211 = vpop.permute.xlu0 %2210
        %2212 = vrot.lane.b32.xlu0 %v1671, 28
        %v2213 = vpop.permute.xlu0 %2212
        %2214 = vrot.lane.b32.xlu0 %v1672, 28
        %v2215 = vpop.permute.xlu0 %2214
        %2216 = vrot.lane.b32.xlu0 %v1673, 28
        %v2217 = vpop.permute.xlu0 %2216
        %2218 = vrot.lane.b32.xlu0 %v1674, 28
        %v2219 = vpop.permute.xlu0 %2218
        %2220 = vrot.lane.b32.xlu0 %v1675, 28
        %v2221 = vpop.permute.xlu0 %2220
        %2222 = vrot.lane.b32.xlu0 %v1676, 28
        %v2223 = vpop.permute.xlu0 %2222
        %2224 = vrot.lane.b32.xlu0 %v1677, 28
        %v2225 = vpop.permute.xlu0 %2224
        %2226 = vrot.lane.b32.xlu0 %v1678, 28
        %v2227 = vpop.permute.xlu0 %2226
        %2228 = vrot.lane.b32.xlu0 %v1679, 28
        %v2229 = vpop.permute.xlu0 %2228
        %2230 = vrot.lane.b32.xlu0 %v1680, 28
        %v2231 = vpop.permute.xlu0 %2230
        %2232 = vrot.lane.b32.xlu0 %v1681, 28
        %v2233 = vpop.permute.xlu0 %2232
        %2234 = vrot.lane.b32.xlu0 %v1682, 28
        %v2235 = vpop.permute.xlu0 %2234
        %2236 = vrot.lane.b32.xlu0 %v1683, 28
        %v2237 = vpop.permute.xlu0 %2236
        %2238 = vrot.lane.b32.xlu0 %v1998, 28
        %v2239 = vpop.permute.xlu0 %2238
        %2240 = vrot.lane.b32.xlu0 %v2208, 28
        %v2241 = vpop.permute.xlu0 %2240
        %2242 = vrot.lane.b32.xlu0 %v1686, 28
        %v2243 = vpop.permute.xlu0 %2242
        %2244 = vrot.lane.b32.xlu0 %v1687, 28
        %v2245 = vpop.permute.xlu0 %2244
        %2246 = vrot.lane.b32.xlu0 %v1688, 28
        %v2247 = vpop.permute.xlu0 %2246
        %2248 = vrot.lane.b32.xlu0 %v1689, 28
        %v2249 = vpop.permute.xlu0 %2248
        %2250 = vrot.lane.b32.xlu0 %v1690, 28
        %v2251 = vpop.permute.xlu0 %2250
        %2252 = vrot.lane.b32.xlu0 %v1691, 28
        %v2253 = vpop.permute.xlu0 %2252
        %2254 = vrot.lane.b32.xlu0 %v1692, 28
        %v2255 = vpop.permute.xlu0 %2254
        %2256 = vrot.lane.b32.xlu0 %v1693, 28
        %v2257 = vpop.permute.xlu0 %2256
        %2258 = vrot.lane.b32.xlu0 %v1694, 28
        %v2259 = vpop.permute.xlu0 %2258
        %2260 = vrot.lane.b32.xlu0 %v1695, 28
        %v2261 = vpop.permute.xlu0 %2260
        %2262 = vrot.lane.b32.xlu0 %v1696, 28
        %v2263 = vpop.permute.xlu0 %2262
        %2264 = vrot.lane.b32.xlu0 %v1697, 28
        %v2265 = vpop.permute.xlu0 %2264
        %2266 = vrot.lane.b32.xlu0 %v1698, 28
        %v2267 = vpop.permute.xlu0 %2266
        %2268 = vrot.lane.b32.xlu0 %v1699, 28
        %v2269 = vpop.permute.xlu0 %2268
        %2270 = vrot.lane.b32.xlu0 %v1999, 28
        %v2271 = vpop.permute.xlu0 %2270
        %2272 = vrot.lane.b32.xlu0 %v2209, 28
        %v2273 = vpop.permute.xlu0 %2272
        %v2274 = vunpack.c.l.b16 %v1497
        %v2275 = vunpack.c.l.b16 %v1500
        %v2276 = vunpack.c.l.b16 %v1504
        %v2277 = vunpack.c.l.b16 %v1507
        %v2278 = vpack.c.b16 %v2275, %v2274
        %v2279 = vpack.c.b16 %v2277, %v2276
        %2280 = vrot.lane.b32.xlu0 %v1830, 32
        %v2281 = vpop.permute.xlu0 %2280
        %2282 = vrot.lane.b32.xlu0 %v1831, 32
        %v2283 = vpop.permute.xlu0 %2282
        %2284 = vrot.lane.b32.xlu0 %v1832, 32
        %v2285 = vpop.permute.xlu0 %2284
        %2286 = vrot.lane.b32.xlu0 %v1833, 32
        %v2287 = vpop.permute.xlu0 %2286
        %2288 = vrot.lane.b32.xlu0 %v1834, 32
        %v2289 = vpop.permute.xlu0 %2288
        %2290 = vrot.lane.b32.xlu0 %v1835, 32
        %v2291 = vpop.permute.xlu0 %2290
        %2292 = vrot.lane.b32.xlu0 %v1836, 32
        %v2293 = vpop.permute.xlu0 %2292
        %2294 = vrot.lane.b32.xlu0 %v1837, 32
        %v2295 = vpop.permute.xlu0 %2294
        %2296 = vrot.lane.b32.xlu0 %v1838, 32
        %v2297 = vpop.permute.xlu0 %2296
        %2298 = vrot.lane.b32.xlu0 %v1839, 32
        %v2299 = vpop.permute.xlu0 %2298
        %2300 = vrot.lane.b32.xlu0 %v1840, 32
        %v2301 = vpop.permute.xlu0 %2300
        %2302 = vrot.lane.b32.xlu0 %v1841, 32
        %v2303 = vpop.permute.xlu0 %2302
        %2304 = vrot.lane.b32.xlu0 %v1842, 32
        %v2305 = vpop.permute.xlu0 %2304
        %2306 = vrot.lane.b32.xlu0 %v1843, 32
        %v2307 = vpop.permute.xlu0 %2306
        %2308 = vrot.lane.b32.xlu0 %v2068, 32
        %v2309 = vpop.permute.xlu0 %2308
        %2310 = vrot.lane.b32.xlu0 %v2278, 32
        %v2311 = vpop.permute.xlu0 %2310
        %2312 = vrot.lane.b32.xlu0 %v1846, 32
        %v2313 = vpop.permute.xlu0 %2312
        %2314 = vrot.lane.b32.xlu0 %v1847, 32
        %v2315 = vpop.permute.xlu0 %2314
        %2316 = vrot.lane.b32.xlu0 %v1848, 32
        %v2317 = vpop.permute.xlu0 %2316
        %2318 = vrot.lane.b32.xlu0 %v1849, 32
        %v2319 = vpop.permute.xlu0 %2318
        %2320 = vrot.lane.b32.xlu0 %v1850, 32
        %v2321 = vpop.permute.xlu0 %2320
        %2322 = vrot.lane.b32.xlu0 %v1851, 32
        %v2323 = vpop.permute.xlu0 %2322
        %2324 = vrot.lane.b32.xlu0 %v1852, 32
        %v2325 = vpop.permute.xlu0 %2324
        %2326 = vrot.lane.b32.xlu0 %v1853, 32
        %v2327 = vpop.permute.xlu0 %2326
        %2328 = vrot.lane.b32.xlu0 %v1854, 32
        %v2329 = vpop.permute.xlu0 %2328
        %2330 = vrot.lane.b32.xlu0 %v1855, 32
        %v2331 = vpop.permute.xlu0 %2330
        %2332 = vrot.lane.b32.xlu0 %v1856, 32
        %v2333 = vpop.permute.xlu0 %2332
        %2334 = vrot.lane.b32.xlu0 %v1857, 32
        %v2335 = vpop.permute.xlu0 %2334
        %2336 = vrot.lane.b32.xlu0 %v1858, 32
        %v2337 = vpop.permute.xlu0 %2336
        %2338 = vrot.lane.b32.xlu0 %v1859, 32
        %v2339 = vpop.permute.xlu0 %2338
        %2340 = vrot.lane.b32.xlu0 %v2069, 32
        %v2341 = vpop.permute.xlu0 %2340
        %2342 = vrot.lane.b32.xlu0 %v2279, 32
        %v2343 = vpop.permute.xlu0 %2342
        %vm2344 = vcmask 31744
        %v2347 = vsel %vm2344, %v1572, %v1701
        %v2350 = vsel %vm2344, %v1573, %v1703
        %v2353 = vsel %vm2344, %v1574, %v1705
        %v2356 = vsel %vm2344, %v1575, %v1707
        %v2359 = vsel %vm2344, %v1576, %v1709
        %v2362 = vsel %vm2344, %v1577, %v1711
        %v2365 = vsel %vm2344, %v1578, %v1713
        %v2368 = vsel %vm2344, %v1579, %v1715
        %v2371 = vsel %vm2344, %v1580, %v1717
        %v2374 = vsel %vm2344, %v1581, %v1719
        %v2377 = vsel %vm2344, %v1582, %v1721
        %v2380 = vsel %vm2344, %v1583, %v1723
        %v2383 = vsel %vm2344, %v1584, %v1725
        %v2386 = vsel %vm2344, %v1585, %v1727
        %v2389 = vsel %vm2344, %v1586, %v1729
        %v2392 = vsel %vm2344, %v1587, %v1731
        %v2395 = vsel %vm2344, %v1588, %v1733
        %v2398 = vsel %vm2344, %v1589, %v1735
        %v2401 = vsel %vm2344, %v1590, %v1737
        %v2404 = vsel %vm2344, %v1591, %v1739
        %v2407 = vsel %vm2344, %v1592, %v1741
        %v2410 = vsel %vm2344, %v1593, %v1743
        %v2413 = vsel %vm2344, %v1594, %v1745
        %v2416 = vsel %vm2344, %v1595, %v1747
        %v2419 = vsel %vm2344, %v1596, %v1749
        %v2422 = vsel %vm2344, %v1597, %v1751
        %v2425 = vsel %vm2344, %v1598, %v1753
        %v2428 = vsel %vm2344, %v1599, %v1755
        %v2431 = vsel %vm2344, %v1600, %v1757
        %v2434 = vsel %vm2344, %v1601, %v1759
        %v2437 = vsel %vm2344, %v1602, %v1761
        %v2440 = vsel %vm2344, %v1603, %v1763
        %vm2441 = vcmask 64512
        %v2443 = vsel %vm2441, %v2347, %v1861
        %v2445 = vsel %vm2441, %v2350, %v1863
        %v2447 = vsel %vm2441, %v2353, %v1865
        %v2449 = vsel %vm2441, %v2356, %v1867
        %v2451 = vsel %vm2441, %v2359, %v1869
        %v2453 = vsel %vm2441, %v2362, %v1871
        %v2455 = vsel %vm2441, %v2365, %v1873
        %v2457 = vsel %vm2441, %v2368, %v1875
        %v2459 = vsel %vm2441, %v2371, %v1877
        %v2461 = vsel %vm2441, %v2374, %v1879
        %v2463 = vsel %vm2441, %v2377, %v1881
        %v2465 = vsel %vm2441, %v2380, %v1883
        %v2467 = vsel %vm2441, %v2383, %v1885
        %v2469 = vsel %vm2441, %v2386, %v1887
        %v2471 = vsel %vm2441, %v2389, %v1889
        %v2473 = vsel %vm2441, %v2392, %v1891
        %v2475 = vsel %vm2441, %v2395, %v1893
        %v2477 = vsel %vm2441, %v2398, %v1895
        %v2479 = vsel %vm2441, %v2401, %v1897
        %v2481 = vsel %vm2441, %v2404, %v1899
        %v2483 = vsel %vm2441, %v2407, %v1901
        %v2485 = vsel %vm2441, %v2410, %v1903
        %v2487 = vsel %vm2441, %v2413, %v1905
        %v2489 = vsel %vm2441, %v2416, %v1907
        %v2491 = vsel %vm2441, %v2419, %v1909
        %v2493 = vsel %vm2441, %v2422, %v1911
        %v2495 = vsel %vm2441, %v2425, %v1913
        %v2497 = vsel %vm2441, %v2428, %v1915
        %v2499 = vsel %vm2441, %v2431, %v1917
        %v2501 = vsel %vm2441, %v2434, %v1919
        %v2503 = vsel %vm2441, %v2437, %v1921
        %v2505 = vsel %vm2441, %v2440, %v1923
        %vm2506 = vcmask 97280
        %v2508 = vsel %vm2506, %v2443, %v1931
        %v2510 = vsel %vm2506, %v2445, %v1933
        %v2512 = vsel %vm2506, %v2447, %v1935
        %v2514 = vsel %vm2506, %v2449, %v1937
        %v2516 = vsel %vm2506, %v2451, %v1939
        %v2518 = vsel %vm2506, %v2453, %v1941
        %v2520 = vsel %vm2506, %v2455, %v1943
        %v2522 = vsel %vm2506, %v2457, %v1945
        %v2524 = vsel %vm2506, %v2459, %v1947
        %v2526 = vsel %vm2506, %v2461, %v1949
        %v2528 = vsel %vm2506, %v2463, %v1951
        %v2530 = vsel %vm2506, %v2465, %v1953
        %v2532 = vsel %vm2506, %v2467, %v1955
        %v2534 = vsel %vm2506, %v2469, %v1957
        %v2536 = vsel %vm2506, %v2471, %v1959
        %v2538 = vsel %vm2506, %v2473, %v1961
        %v2540 = vsel %vm2506, %v2475, %v1963
        %v2542 = vsel %vm2506, %v2477, %v1965
        %v2544 = vsel %vm2506, %v2479, %v1967
        %v2546 = vsel %vm2506, %v2481, %v1969
        %v2548 = vsel %vm2506, %v2483, %v1971
        %v2550 = vsel %vm2506, %v2485, %v1973
        %v2552 = vsel %vm2506, %v2487, %v1975
        %v2554 = vsel %vm2506, %v2489, %v1977
        %v2556 = vsel %vm2506, %v2491, %v1979
        %v2558 = vsel %vm2506, %v2493, %v1981
        %v2560 = vsel %vm2506, %v2495, %v1983
        %v2562 = vsel %vm2506, %v2497, %v1985
        %v2564 = vsel %vm2506, %v2499, %v1987
        %v2566 = vsel %vm2506, %v2501, %v1989
        %v2568 = vsel %vm2506, %v2503, %v1991
        %v2570 = vsel %vm2506, %v2505, %v1993
        %vm2571 = vcmask 130048
        %v2573 = vsel %vm2571, %v2508, %v2001
        %v2575 = vsel %vm2571, %v2510, %v2003
        %v2577 = vsel %vm2571, %v2512, %v2005
        %v2579 = vsel %vm2571, %v2514, %v2007
        %v2581 = vsel %vm2571, %v2516, %v2009
        %v2583 = vsel %vm2571, %v2518, %v2011
        %v2585 = vsel %vm2571, %v2520, %v2013
        %v2587 = vsel %vm2571, %v2522, %v2015
        %v2589 = vsel %vm2571, %v2524, %v2017
        %v2591 = vsel %vm2571, %v2526, %v2019
        %v2593 = vsel %vm2571, %v2528, %v2021
        %v2595 = vsel %vm2571, %v2530, %v2023
        %v2597 = vsel %vm2571, %v2532, %v2025
        %v2599 = vsel %vm2571, %v2534, %v2027
        %v2601 = vsel %vm2571, %v2536, %v2029
        %v2603 = vsel %vm2571, %v2538, %v2031
        %v2605 = vsel %vm2571, %v2540, %v2033
        %v2607 = vsel %vm2571, %v2542, %v2035
        %v2609 = vsel %vm2571, %v2544, %v2037
        %v2611 = vsel %vm2571, %v2546, %v2039
        %v2613 = vsel %vm2571, %v2548, %v2041
        %v2615 = vsel %vm2571, %v2550, %v2043
        %v2617 = vsel %vm2571, %v2552, %v2045
        %v2619 = vsel %vm2571, %v2554, %v2047
        %v2621 = vsel %vm2571, %v2556, %v2049
        %v2623 = vsel %vm2571, %v2558, %v2051
        %v2625 = vsel %vm2571, %v2560, %v2053
        %v2627 = vsel %vm2571, %v2562, %v2055
        %v2629 = vsel %vm2571, %v2564, %v2057
        %v2631 = vsel %vm2571, %v2566, %v2059
        %v2633 = vsel %vm2571, %v2568, %v2061
        %v2635 = vsel %vm2571, %v2570, %v2063
        %vm2636 = vcmask 162816
        %v2638 = vsel %vm2636, %v2573, %v2071
        %v2640 = vsel %vm2636, %v2575, %v2073
        %v2642 = vsel %vm2636, %v2577, %v2075
        %v2644 = vsel %vm2636, %v2579, %v2077
        %v2646 = vsel %vm2636, %v2581, %v2079
        %v2648 = vsel %vm2636, %v2583, %v2081
        %v2650 = vsel %vm2636, %v2585, %v2083
        %v2652 = vsel %vm2636, %v2587, %v2085
        %v2654 = vsel %vm2636, %v2589, %v2087
        %v2656 = vsel %vm2636, %v2591, %v2089
        %v2658 = vsel %vm2636, %v2593, %v2091
        %v2660 = vsel %vm2636, %v2595, %v2093
        %v2662 = vsel %vm2636, %v2597, %v2095
        %v2664 = vsel %vm2636, %v2599, %v2097
        %v2666 = vsel %vm2636, %v2601, %v2099
        %v2668 = vsel %vm2636, %v2603, %v2101
        %v2670 = vsel %vm2636, %v2605, %v2103
        %v2672 = vsel %vm2636, %v2607, %v2105
        %v2674 = vsel %vm2636, %v2609, %v2107
        %v2676 = vsel %vm2636, %v2611, %v2109
        %v2678 = vsel %vm2636, %v2613, %v2111
        %v2680 = vsel %vm2636, %v2615, %v2113
        %v2682 = vsel %vm2636, %v2617, %v2115
        %v2684 = vsel %vm2636, %v2619, %v2117
        %v2686 = vsel %vm2636, %v2621, %v2119
        %v2688 = vsel %vm2636, %v2623, %v2121
        %v2690 = vsel %vm2636, %v2625, %v2123
        %v2692 = vsel %vm2636, %v2627, %v2125
        %v2694 = vsel %vm2636, %v2629, %v2127
        %v2696 = vsel %vm2636, %v2631, %v2129
        %v2698 = vsel %vm2636, %v2633, %v2131
        %v2700 = vsel %vm2636, %v2635, %v2133
        %vm2701 = vcmask 195584
        %v2703 = vsel %vm2701, %v2638, %v2141
        %v2705 = vsel %vm2701, %v2640, %v2143
        %v2707 = vsel %vm2701, %v2642, %v2145
        %v2709 = vsel %vm2701, %v2644, %v2147
        %v2711 = vsel %vm2701, %v2646, %v2149
        %v2713 = vsel %vm2701, %v2648, %v2151
        %v2715 = vsel %vm2701, %v2650, %v2153
        %v2717 = vsel %vm2701, %v2652, %v2155
        %v2719 = vsel %vm2701, %v2654, %v2157
        %v2721 = vsel %vm2701, %v2656, %v2159
        %v2723 = vsel %vm2701, %v2658, %v2161
        %v2725 = vsel %vm2701, %v2660, %v2163
        %v2727 = vsel %vm2701, %v2662, %v2165
        %v2729 = vsel %vm2701, %v2664, %v2167
        %v2731 = vsel %vm2701, %v2666, %v2169
        %v2733 = vsel %vm2701, %v2668, %v2171
        %v2735 = vsel %vm2701, %v2670, %v2173
        %v2737 = vsel %vm2701, %v2672, %v2175
        %v2739 = vsel %vm2701, %v2674, %v2177
        %v2741 = vsel %vm2701, %v2676, %v2179
        %v2743 = vsel %vm2701, %v2678, %v2181
        %v2745 = vsel %vm2701, %v2680, %v2183
        %v2747 = vsel %vm2701, %v2682, %v2185
        %v2749 = vsel %vm2701, %v2684, %v2187
        %v2751 = vsel %vm2701, %v2686, %v2189
        %v2753 = vsel %vm2701, %v2688, %v2191
        %v2755 = vsel %vm2701, %v2690, %v2193
        %v2757 = vsel %vm2701, %v2692, %v2195
        %v2759 = vsel %vm2701, %v2694, %v2197
        %v2761 = vsel %vm2701, %v2696, %v2199
        %v2763 = vsel %vm2701, %v2698, %v2201
        %v2765 = vsel %vm2701, %v2700, %v2203
        %vm2766 = vcmask 228352
        %v2768 = vsel %vm2766, %v2703, %v2211
        %v2770 = vsel %vm2766, %v2705, %v2213
        %v2772 = vsel %vm2766, %v2707, %v2215
        %v2774 = vsel %vm2766, %v2709, %v2217
        %v2776 = vsel %vm2766, %v2711, %v2219
        %v2778 = vsel %vm2766, %v2713, %v2221
        %v2780 = vsel %vm2766, %v2715, %v2223
        %v2782 = vsel %vm2766, %v2717, %v2225
        %v2784 = vsel %vm2766, %v2719, %v2227
        %v2786 = vsel %vm2766, %v2721, %v2229
        %v2788 = vsel %vm2766, %v2723, %v2231
        %v2790 = vsel %vm2766, %v2725, %v2233
        %v2792 = vsel %vm2766, %v2727, %v2235
        %v2794 = vsel %vm2766, %v2729, %v2237
        %v2796 = vsel %vm2766, %v2731, %v2239
        %v2798 = vsel %vm2766, %v2733, %v2241
        %v2800 = vsel %vm2766, %v2735, %v2243
        %v2802 = vsel %vm2766, %v2737, %v2245
        %v2804 = vsel %vm2766, %v2739, %v2247
        %v2806 = vsel %vm2766, %v2741, %v2249
        %v2808 = vsel %vm2766, %v2743, %v2251
        %v2810 = vsel %vm2766, %v2745, %v2253
        %v2812 = vsel %vm2766, %v2747, %v2255
        %v2814 = vsel %vm2766, %v2749, %v2257
        %v2816 = vsel %vm2766, %v2751, %v2259
        %v2818 = vsel %vm2766, %v2753, %v2261
        %v2820 = vsel %vm2766, %v2755, %v2263
        %v2822 = vsel %vm2766, %v2757, %v2265
        %v2824 = vsel %vm2766, %v2759, %v2267
        %v2826 = vsel %vm2766, %v2761, %v2269
        %v2828 = vsel %vm2766, %v2763, %v2271
        %v2830 = vsel %vm2766, %v2765, %v2273
        %vm2831 = vcmask 261120
        %v2833 = vsel %vm2831, %v2768, %v2281
        %v2835 = vsel %vm2831, %v2770, %v2283
        %v2837 = vsel %vm2831, %v2772, %v2285
        %v2839 = vsel %vm2831, %v2774, %v2287
        %v2841 = vsel %vm2831, %v2776, %v2289
        %v2843 = vsel %vm2831, %v2778, %v2291
        %v2845 = vsel %vm2831, %v2780, %v2293
        %v2847 = vsel %vm2831, %v2782, %v2295
        %v2849 = vsel %vm2831, %v2784, %v2297
        %v2851 = vsel %vm2831, %v2786, %v2299
        %v2853 = vsel %vm2831, %v2788, %v2301
        %v2855 = vsel %vm2831, %v2790, %v2303
        %v2857 = vsel %vm2831, %v2792, %v2305
        %v2859 = vsel %vm2831, %v2794, %v2307
        %v2861 = vsel %vm2831, %v2796, %v2309
        %v2863 = vsel %vm2831, %v2798, %v2311
        %v2865 = vsel %vm2831, %v2800, %v2313
        %v2867 = vsel %vm2831, %v2802, %v2315
        %v2869 = vsel %vm2831, %v2804, %v2317
        %v2871 = vsel %vm2831, %v2806, %v2319
        %v2873 = vsel %vm2831, %v2808, %v2321
        %v2875 = vsel %vm2831, %v2810, %v2323
        %v2877 = vsel %vm2831, %v2812, %v2325
        %v2879 = vsel %vm2831, %v2814, %v2327
        %v2881 = vsel %vm2831, %v2816, %v2329
        %v2883 = vsel %vm2831, %v2818, %v2331
        %v2885 = vsel %vm2831, %v2820, %v2333
        %v2887 = vsel %vm2831, %v2822, %v2335
        %v2889 = vsel %vm2831, %v2824, %v2337
        %v2891 = vsel %vm2831, %v2826, %v2339
        %v2893 = vsel %vm2831, %v2828, %v2341
        %v2895 = vsel %vm2831, %v2830, %v2343
        %v2896 = vld [vmem:[%s1] sm:$0xf]
        %v2897 = vld [vmem:[%s1 + $0x4] sm:$0xf]
        %v2898 = vld [vmem:[%s1 + $0x8] sm:$0xf]
        %v2899 = vld [vmem:[%s1 + $0xc] sm:$0xf]
        %v2900 = vld [vmem:[%s1 + $0x10] sm:$0x3]
        %v2901 = vld [vmem:[%s2] sm:$0x1]
        %v2903 = vperm.slane %v2901, 0
        %v2910 = vunpack.c.l.b16 %v2896
        %v2911 = vunpack.c.l.b16 %v2897
        %v2912 = vunpack.c.l.b16 %v2898
        %v2913 = vunpack.c.l.b16 %v2899
        %v2914 = vunpack.c.l.b16 %v2900
        %v2915 = vpack.c.b16 %v2911, %v2910
        %v2916 = vpack.c.b16 %v2913, %v2912
        %v2917 = vpack.c.b16 %v2914, %v2914
        %vm2920 = vcmask 293888
        %v2921 = vsel %vm2920, %v2833, 0
        %v2923 = vsel %vm2920, %v2835, 0
        %v2925 = vsel %vm2920, %v2837, 0
        %v2927 = vsel %vm2920, %v2839, 0
        %v2929 = vsel %vm2920, %v2841, 0
        %v2931 = vsel %vm2920, %v2843, 0
        %v2933 = vsel %vm2920, %v2845, 0
        %v2935 = vsel %vm2920, %v2847, 0
        %v2937 = vsel %vm2920, %v2849, 0
        %v2939 = vsel %vm2920, %v2851, 0
        %v2941 = vsel %vm2920, %v2853, 0
        %v2943 = vsel %vm2920, %v2855, 0
        %v2945 = vsel %vm2920, %v2857, 0
        %v2947 = vsel %vm2920, %v2859, 0
        %v2949 = vsel %vm2920, %v2861, 0
        %v2951 = vsel %vm2920, %v2863, 0
        %v2953 = vsel %vm2920, %v2865, 0
        %v2955 = vsel %vm2920, %v2867, 0
        %v2957 = vsel %vm2920, %v2869, 0
        %v2959 = vsel %vm2920, %v2871, 0
        %v2961 = vsel %vm2920, %v2873, 0
        %v2963 = vsel %vm2920, %v2875, 0
        %v2965 = vsel %vm2920, %v2877, 0
        %v2967 = vsel %vm2920, %v2879, 0
        %v2969 = vsel %vm2920, %v2881, 0
        %v2971 = vsel %vm2920, %v2883, 0
        %v2973 = vsel %vm2920, %v2885, 0
        %v2975 = vsel %vm2920, %v2887, 0
        %v2977 = vsel %vm2920, %v2889, 0
        %v2979 = vsel %vm2920, %v2891, 0
        %v2981 = vsel %vm2920, %v2893, 0
        %v2983 = vsel %vm2920, %v2895, 0
        %vm2985 = vcmask 1041408
        %v2987 = vsel %vm2985, %v2917, 0
        %2989 = vmatpush.bf16.msra.mxu0 0
        %2990 = vmatpush.bf16.msra.mxu0 0
        %2991 = vmatpush.bf16.msra.mxu0 0
        %2992 = vmatpush.bf16.msra.mxu0 0
        %2993 = vmatpush.bf16.msra.mxu0 0
        %2994 = vmatpush.bf16.msra.mxu0 %v2987
        %2995 = vmatpush.bf16.msra.mxu0 %v2916
        %2996 = vmatpush.bf16.msra.mxu0 %v2915
        %2997 = vmatmul.bf16.gmra.mxu0 %v2921
        %v2998 = vpop.f32.mrf.mxu0
        %v2999 = vadd.f32 %v2903, %v2998
        %v3000 = vpop.f32.mrf.mxu0
        %v3001 = vadd.f32 %v2903, %v3000
        %3002 = vmatmul.bf16.gmra.mxu0 %v2923
        %v3003 = vpop.f32.mrf.mxu0
        %v3004 = vadd.f32 %v2903, %v3003
        %v3005 = vpop.f32.mrf.mxu0
        %v3006 = vadd.f32 %v2903, %v3005
        %3007 = vmatmul.bf16.gmra.mxu0 %v2925
        %v3008 = vpop.f32.mrf.mxu0
        %v3009 = vadd.f32 %v2903, %v3008
        %v3010 = vpop.f32.mrf.mxu0
        %v3011 = vadd.f32 %v2903, %v3010
        %3012 = vmatmul.bf16.gmra.mxu0 %v2927
        %v3013 = vpop.f32.mrf.mxu0
        %v3014 = vadd.f32 %v2903, %v3013
        %v3015 = vpop.f32.mrf.mxu0
        %v3016 = vadd.f32 %v2903, %v3015
        %3017 = vmatmul.bf16.gmra.mxu0 %v2929
        %v3018 = vpop.f32.mrf.mxu0
        %v3019 = vadd.f32 %v2903, %v3018
        %v3020 = vpop.f32.mrf.mxu0
        %v3021 = vadd.f32 %v2903, %v3020
        %3022 = vmatmul.bf16.gmra.mxu0 %v2931
        %v3023 = vpop.f32.mrf.mxu0
        %v3024 = vadd.f32 %v2903, %v3023
        %v3025 = vpop.f32.mrf.mxu0
        %v3026 = vadd.f32 %v2903, %v3025
        %3027 = vmatmul.bf16.gmra.mxu0 %v2933
        %v3028 = vpop.f32.mrf.mxu0
        %v3029 = vadd.f32 %v2903, %v3028
        %v3030 = vpop.f32.mrf.mxu0
        %v3031 = vadd.f32 %v2903, %v3030
        %3032 = vmatmul.bf16.gmra.mxu0 %v2935
        %v3033 = vpop.f32.mrf.mxu0
        %v3034 = vadd.f32 %v2903, %v3033
        %v3035 = vpop.f32.mrf.mxu0
        %v3036 = vadd.f32 %v2903, %v3035
        %3037 = vmatmul.bf16.gmra.mxu0 %v2937
        %v3038 = vpop.f32.mrf.mxu0
        %v3039 = vadd.f32 %v2903, %v3038
        %v3040 = vpop.f32.mrf.mxu0
        %v3041 = vadd.f32 %v2903, %v3040
        %3042 = vmatmul.bf16.gmra.mxu0 %v2939
        %v3043 = vpop.f32.mrf.mxu0
        %v3044 = vadd.f32 %v2903, %v3043
        %v3045 = vpop.f32.mrf.mxu0
        %v3046 = vadd.f32 %v2903, %v3045
        %3047 = vmatmul.bf16.gmra.mxu0 %v2941
        %v3048 = vpop.f32.mrf.mxu0
        %v3049 = vadd.f32 %v2903, %v3048
        %v3050 = vpop.f32.mrf.mxu0
        %v3051 = vadd.f32 %v2903, %v3050
        %3052 = vmatmul.bf16.gmra.mxu0 %v2943
        %v3053 = vpop.f32.mrf.mxu0
        %v3054 = vadd.f32 %v2903, %v3053
        %v3055 = vpop.f32.mrf.mxu0
        %v3056 = vadd.f32 %v2903, %v3055
        %3057 = vmatmul.bf16.gmra.mxu0 %v2945
        %v3058 = vpop.f32.mrf.mxu0
        %v3059 = vadd.f32 %v2903, %v3058
        %v3060 = vpop.f32.mrf.mxu0
        %v3061 = vadd.f32 %v2903, %v3060
        %3062 = vmatmul.bf16.gmra.mxu0 %v2947
        %v3063 = vpop.f32.mrf.mxu0
        %v3064 = vadd.f32 %v2903, %v3063
        %v3065 = vpop.f32.mrf.mxu0
        %v3066 = vadd.f32 %v2903, %v3065
        %3067 = vmatmul.bf16.gmra.mxu0 %v2949
        %v3068 = vpop.f32.mrf.mxu0
        %v3069 = vadd.f32 %v2903, %v3068
        %v3070 = vpop.f32.mrf.mxu0
        %v3071 = vadd.f32 %v2903, %v3070
        %3072 = vmatmul.bf16.gmra.mxu0 %v2951
        %v3073 = vpop.f32.mrf.mxu0
        %v3074 = vadd.f32 %v2903, %v3073
        %v3075 = vpop.f32.mrf.mxu0
        %v3076 = vadd.f32 %v2903, %v3075
        %3077 = vmatmul.bf16.gmra.mxu0 %v2953
        %v3078 = vpop.f32.mrf.mxu0
        %v3079 = vadd.f32 %v2903, %v3078
        %v3080 = vpop.f32.mrf.mxu0
        %v3081 = vadd.f32 %v2903, %v3080
        %3082 = vmatmul.bf16.gmra.mxu0 %v2955
        %v3083 = vpop.f32.mrf.mxu0
        %v3084 = vadd.f32 %v2903, %v3083
        %v3085 = vpop.f32.mrf.mxu0
        %v3086 = vadd.f32 %v2903, %v3085
        %3087 = vmatmul.bf16.gmra.mxu0 %v2957
        %v3088 = vpop.f32.mrf.mxu0
        %v3089 = vadd.f32 %v2903, %v3088
        %v3090 = vpop.f32.mrf.mxu0
        %v3091 = vadd.f32 %v2903, %v3090
        %3092 = vmatmul.bf16.gmra.mxu0 %v2959
        %v3093 = vpop.f32.mrf.mxu0
        %v3094 = vadd.f32 %v2903, %v3093
        %v3095 = vpop.f32.mrf.mxu0
        %v3096 = vadd.f32 %v2903, %v3095
        %3097 = vmatmul.bf16.gmra.mxu0 %v2961
        %v3098 = vpop.f32.mrf.mxu0
        %v3099 = vadd.f32 %v2903, %v3098
        %v3100 = vpop.f32.mrf.mxu0
        %v3101 = vadd.f32 %v2903, %v3100
        %3102 = vmatmul.bf16.gmra.mxu0 %v2963
        %v3103 = vpop.f32.mrf.mxu0
        %v3104 = vadd.f32 %v2903, %v3103
        %v3105 = vpop.f32.mrf.mxu0
        %v3106 = vadd.f32 %v2903, %v3105
        %3107 = vmatmul.bf16.gmra.mxu0 %v2965
        %v3108 = vpop.f32.mrf.mxu0
        %v3109 = vadd.f32 %v2903, %v3108
        %v3110 = vpop.f32.mrf.mxu0
        %v3111 = vadd.f32 %v2903, %v3110
        %3112 = vmatmul.bf16.gmra.mxu0 %v2967
        %v3113 = vpop.f32.mrf.mxu0
        %v3114 = vadd.f32 %v2903, %v3113
        %v3115 = vpop.f32.mrf.mxu0
        %v3116 = vadd.f32 %v2903, %v3115
        %3117 = vmatmul.bf16.gmra.mxu0 %v2969
        %v3118 = vpop.f32.mrf.mxu0
        %v3119 = vadd.f32 %v2903, %v3118
        %v3120 = vpop.f32.mrf.mxu0
        %v3121 = vadd.f32 %v2903, %v3120
        %3122 = vmatmul.bf16.gmra.mxu0 %v2971
        %v3123 = vpop.f32.mrf.mxu0
        %v3124 = vadd.f32 %v2903, %v3123
        %v3125 = vpop.f32.mrf.mxu0
        %v3126 = vadd.f32 %v2903, %v3125
        %3127 = vmatmul.bf16.gmra.mxu0 %v2973
        %v3128 = vpop.f32.mrf.mxu0
        %v3129 = vadd.f32 %v2903, %v3128
        %v3130 = vpop.f32.mrf.mxu0
        %v3131 = vadd.f32 %v2903, %v3130
        %3132 = vmatmul.bf16.gmra.mxu0 %v2975
        %v3133 = vpop.f32.mrf.mxu0
        %v3134 = vadd.f32 %v2903, %v3133
        %v3135 = vpop.f32.mrf.mxu0
        %v3136 = vadd.f32 %v2903, %v3135
        %3137 = vmatmul.bf16.gmra.mxu0 %v2977
        %v3138 = vpop.f32.mrf.mxu0
        %v3139 = vadd.f32 %v2903, %v3138
        %v3140 = vpop.f32.mrf.mxu0
        %v3141 = vadd.f32 %v2903, %v3140
        %3142 = vmatmul.bf16.gmra.mxu0 %v2979
        %v3143 = vpop.f32.mrf.mxu0
        %v3144 = vadd.f32 %v2903, %v3143
        %v3145 = vpop.f32.mrf.mxu0
        %v3146 = vadd.f32 %v2903, %v3145
        %3147 = vmatmul.bf16.gmra.mxu0 %v2981
        %v3148 = vpop.f32.mrf.mxu0
        %v3149 = vadd.f32 %v2903, %v3148
        %v3150 = vpop.f32.mrf.mxu0
        %v3151 = vadd.f32 %v2903, %v3150
        %3152 = vmatmul.bf16.gmra.mxu0 %v2983
        %v3153 = vpop.f32.mrf.mxu0
        %v3154 = vadd.f32 %v2903, %v3153
        %v3155 = vpop.f32.mrf.mxu0
        %v3156 = vadd.f32 %v2903, %v3155
        %3157 = vdwg.mxu0
        %v3158 = vpack.c.bf16 %v2999, %v2999
        %v3159 = vpack.c.bf16 %v3001, %v3001
        %v3160 = vpack.c.bf16 %v3004, %v3004
        %v3161 = vpack.c.bf16 %v3006, %v3006
        %v3162 = vpack.c.bf16 %v3009, %v3009
        %v3163 = vpack.c.bf16 %v3011, %v3011
        %v3164 = vpack.c.bf16 %v3014, %v3014
        %v3165 = vpack.c.bf16 %v3016, %v3016
        %v3166 = vpack.c.bf16 %v3019, %v3019
        %v3167 = vpack.c.bf16 %v3021, %v3021
        %v3168 = vpack.c.bf16 %v3024, %v3024
        %v3169 = vpack.c.bf16 %v3026, %v3026
        %v3170 = vpack.c.bf16 %v3029, %v3029
        %v3171 = vpack.c.bf16 %v3031, %v3031
        %v3172 = vpack.c.bf16 %v3034, %v3034
        %v3173 = vpack.c.bf16 %v3036, %v3036
        %v3174 = vpack.c.bf16 %v3039, %v3039
        %v3175 = vpack.c.bf16 %v3041, %v3041
        %v3176 = vpack.c.bf16 %v3044, %v3044
        %v3177 = vpack.c.bf16 %v3046, %v3046
        %v3178 = vpack.c.bf16 %v3049, %v3049
        %v3179 = vpack.c.bf16 %v3051, %v3051
        %v3180 = vpack.c.bf16 %v3054, %v3054
        %v3181 = vpack.c.bf16 %v3056, %v3056
        %v3182 = vpack.c.bf16 %v3059, %v3059
        %v3183 = vpack.c.bf16 %v3061, %v3061
        %v3184 = vpack.c.bf16 %v3064, %v3064
        %v3185 = vpack.c.bf16 %v3066, %v3066
        %v3186 = vpack.c.bf16 %v3069, %v3069
        %v3187 = vpack.c.bf16 %v3071, %v3071
        %v3188 = vpack.c.bf16 %v3074, %v3074
        %v3189 = vpack.c.bf16 %v3076, %v3076
        %v3190 = vpack.c.bf16 %v3079, %v3079
        %v3191 = vpack.c.bf16 %v3081, %v3081
        %v3192 = vpack.c.bf16 %v3084, %v3084
        %v3193 = vpack.c.bf16 %v3086, %v3086
        %v3194 = vpack.c.bf16 %v3089, %v3089
        %v3195 = vpack.c.bf16 %v3091, %v3091
        %v3196 = vpack.c.bf16 %v3094, %v3094
        %v3197 = vpack.c.bf16 %v3096, %v3096
        %v3198 = vpack.c.bf16 %v3099, %v3099
        %v3199 = vpack.c.bf16 %v3101, %v3101
        %v3200 = vpack.c.bf16 %v3104, %v3104
        %v3201 = vpack.c.bf16 %v3106, %v3106
        %v3202 = vpack.c.bf16 %v3109, %v3109
        %v3203 = vpack.c.bf16 %v3111, %v3111
        %v3204 = vpack.c.bf16 %v3114, %v3114
        %v3205 = vpack.c.bf16 %v3116, %v3116
        %v3206 = vpack.c.bf16 %v3119, %v3119
        %v3207 = vpack.c.bf16 %v3121, %v3121
        %v3208 = vpack.c.bf16 %v3124, %v3124
        %v3209 = vpack.c.bf16 %v3126, %v3126
        %v3210 = vpack.c.bf16 %v3129, %v3129
        %v3211 = vpack.c.bf16 %v3131, %v3131
        %v3212 = vpack.c.bf16 %v3134, %v3134
        %v3213 = vpack.c.bf16 %v3136, %v3136
        %v3214 = vpack.c.bf16 %v3139, %v3139
        %v3215 = vpack.c.bf16 %v3141, %v3141
        %v3216 = vpack.c.bf16 %v3144, %v3144
        %v3217 = vpack.c.bf16 %v3146, %v3146
        %v3218 = vpack.c.bf16 %v3149, %v3149
        %v3219 = vpack.c.bf16 %v3151, %v3151
        %v3220 = vpack.c.bf16 %v3154, %v3154
        %v3221 = vpack.c.bf16 %v3156, %v3156
        %3222 = vst [vmem:[%s163] sm:$0xf] %v3158
        %3223 = vst [vmem:[%s163 + $0x4] sm:$0xf] %v3159
        %3224 = vst [vmem:[%s163 + $0x8] sm:$0xf] %v3160
        %3225 = vst [vmem:[%s163 + $0xc] sm:$0xf] %v3161
        %3226 = vst [vmem:[%s163 + $0x10] sm:$0xf] %v3162
        %3227 = vst [vmem:[%s163 + $0x14] sm:$0xf] %v3163
        %3228 = vst [vmem:[%s163 + $0x18] sm:$0xf] %v3164
        %3229 = vst [vmem:[%s163 + $0x1c] sm:$0xf] %v3165
        %3230 = vst [vmem:[%s163 + $0x20] sm:$0xf] %v3166
        %3231 = vst [vmem:[%s163 + $0x24] sm:$0xf] %v3167
        %3232 = vst [vmem:[%s163 + $0x28] sm:$0xf] %v3168
        %3233 = vst [vmem:[%s163 + $0x2c] sm:$0xf] %v3169
        %3234 = vst [vmem:[%s163 + $0x30] sm:$0xf] %v3170
        %3235 = vst [vmem:[%s163 + $0x34] sm:$0xf] %v3171
        %3236 = vst [vmem:[%s163 + $0x38] sm:$0xf] %v3172
        %3237 = vst [vmem:[%s163 + $0x3c] sm:$0xf] %v3173
        %3238 = vst [vmem:[%s163 + $0x40] sm:$0xf] %v3174
        %3239 = vst [vmem:[%s163 + $0x44] sm:$0xf] %v3175
        %3240 = vst [vmem:[%s163 + $0x48] sm:$0xf] %v3176
        %3241 = vst [vmem:[%s163 + $0x4c] sm:$0xf] %v3177
        %3242 = vst [vmem:[%s163 + $0x50] sm:$0xf] %v3178
        %3243 = vst [vmem:[%s163 + $0x54] sm:$0xf] %v3179
        %3244 = vst [vmem:[%s163 + $0x58] sm:$0xf] %v3180
        %3245 = vst [vmem:[%s163 + $0x5c] sm:$0xf] %v3181
        %3246 = vst [vmem:[%s163 + $0x60] sm:$0xf] %v3182
        %3247 = vst [vmem:[%s163 + $0x64] sm:$0xf] %v3183
        %3248 = vst [vmem:[%s163 + $0x68] sm:$0xf] %v3184
        %3249 = vst [vmem:[%s163 + $0x6c] sm:$0xf] %v3185
        %3250 = vst [vmem:[%s163 + $0x70] sm:$0xf] %v3186
        %3251 = vst [vmem:[%s163 + $0x74] sm:$0xf] %v3187
        %3252 = vst [vmem:[%s163 + $0x78] sm:$0xf] %v3188
        %3253 = vst [vmem:[%s163 + $0x7c] sm:$0xf] %v3189
        %3254 = vst [vmem:[%s163 + $0x80] sm:$0xf] %v3190
        %3255 = vst [vmem:[%s163 + $0x84] sm:$0xf] %v3191
        %3256 = vst [vmem:[%s163 + $0x88] sm:$0xf] %v3192
        %3257 = vst [vmem:[%s163 + $0x8c] sm:$0xf] %v3193
        %3258 = vst [vmem:[%s163 + $0x90] sm:$0xf] %v3194
        %3259 = vst [vmem:[%s163 + $0x94] sm:$0xf] %v3195
        %3260 = vst [vmem:[%s163 + $0x98] sm:$0xf] %v3196
        %3261 = vst [vmem:[%s163 + $0x9c] sm:$0xf] %v3197
        %3262 = vst [vmem:[%s163 + $0xa0] sm:$0xf] %v3198
        %3263 = vst [vmem:[%s163 + $0xa4] sm:$0xf] %v3199
        %3264 = vst [vmem:[%s163 + $0xa8] sm:$0xf] %v3200
        %3265 = vst [vmem:[%s163 + $0xac] sm:$0xf] %v3201
        %3266 = vst [vmem:[%s163 + $0xb0] sm:$0xf] %v3202
        %3267 = vst [vmem:[%s163 + $0xb4] sm:$0xf] %v3203
        %3268 = vst [vmem:[%s163 + $0xb8] sm:$0xf] %v3204
        %3269 = vst [vmem:[%s163 + $0xbc] sm:$0xf] %v3205
        %3270 = vst [vmem:[%s163 + $0xc0] sm:$0xf] %v3206
        %3271 = vst [vmem:[%s163 + $0xc4] sm:$0xf] %v3207
        %3272 = vst [vmem:[%s163 + $0xc8] sm:$0xf] %v3208
        %3273 = vst [vmem:[%s163 + $0xcc] sm:$0xf] %v3209
        %3274 = vst [vmem:[%s163 + $0xd0] sm:$0xf] %v3210
        %3275 = vst [vmem:[%s163 + $0xd4] sm:$0xf] %v3211
        %3276 = vst [vmem:[%s163 + $0xd8] sm:$0xf] %v3212
        %3277 = vst [vmem:[%s163 + $0xdc] sm:$0xf] %v3213
        %3278 = vst [vmem:[%s163 + $0xe0] sm:$0xf] %v3214
        %3279 = vst [vmem:[%s163 + $0xe4] sm:$0xf] %v3215
        %3280 = vst [vmem:[%s163 + $0xe8] sm:$0xf] %v3216
        %3281 = vst [vmem:[%s163 + $0xec] sm:$0xf] %v3217
        %3282 = vst [vmem:[%s163 + $0xf0] sm:$0xf] %v3218
        %3283 = vst [vmem:[%s163 + $0xf4] sm:$0xf] %v3219
        %3284 = vst [vmem:[%s163 + $0xf8] sm:$0xf] %v3220
        %3285 = vst [vmem:[%s163 + $0xfc] sm:$0xf] %v3221
        %s3286 = sand.u32 %s93, 1
        %s3287 = scalar_lea.sflag [#allocation3], %s3286
        %s3288 = sand.u32 %s93, 1
        %s3289 = smul.addr %s3288, 256
        %s3290 = scalar_lea.vmem [#allocation2], %s3289
        // Predicated region
        $region33: #{tpu_custom_call.1} parent=31 // pred_check
          %p3291 = pneg %p103
        $region34: #{tpu_custom_call.1} parent=31 // pred_check_branch
          %3293 = sbr.rel (%p3291) target = $region36
        $region35: #{tpu_custom_call.1} parent=31 // pred_region
          %3295 = vsyncadd %s3287, 0
          %s3296 = smul.addr %s17, 64
          %s3297 = smul.addr %s3296, 4
          %s3298 = scalar_lea.hbm %s3, %s3297
          %s3299 = sshll.u32 %s3290, 4
          %s3300 = int_to_ptr.vmem [resolvable:$true] %s3299
          %s3301 = sshll.u32 %s3298, 4
          %s3302 = int_to_ptr.hbm [resolvable:$true] %s3301
          %3307 = dma.vmem_to_hbm [thread:$0]  %s3300, 4096, %s3302, %s3287, 64, 64, 4
        $region36: #{tpu_custom_call.1} parent=31 // pred_fallthru
          _
      $region32: #{tpu_custom_call.1} parent=5 // pred_fallthru
        _
      %p3308 = scmp.le.s32.totalorder 2, %s12
      // Predicated region
      $region37: #{tpu_custom_call.1} parent=5 // pred_check
        %p3309 = pneg %p3308
      $region38: #{tpu_custom_call.1} parent=5 // pred_check_branch
        %3311 = sbr.rel (%p3309) target = $region40
      $region39: #{tpu_custom_call.1} parent=5 // pred_region
        %s3312 = ssub.s32 %s12, 2
        // Predicated region
        $region41: #{tpu_custom_call.1} parent=39 // pred_check
          %p3313 = pneg %p109
        $region42: #{tpu_custom_call.1} parent=39 // pred_check_branch
          %3315 = sbr.rel (%p3313) target = $region44
        $region43: #{tpu_custom_call.1} parent=39 // pred_region
          %s3316 = sand.u32 %s94, 1
          %s3317 = scalar_lea.sflag [#allocation3], %s3316
          %s3318 = sand.u32 %s94, 1
          %s3319 = smul.addr %s3318, 256
          %s3320 = scalar_lea.vmem [#allocation2], %s3319
          %3322 = dma.done %s3317, 4096
        $region44: #{tpu_custom_call.1} parent=39 // pred_fallthru
          _
      $region40: #{tpu_custom_call.1} parent=5 // pred_fallthru
        _
    $region6: #{tpu_custom_call.1} parent=1 // loop_footer
      %s16 = sadd.s32 1, %s12
    $region7: #{tpu_custom_call.1} parent=1 // loop_footer_branch
      %11 = sbr.rel target = $region3
    $region8: #{tpu_custom_call.1} parent=1 // loop_exit
      _
    %3323 = vsyncpa [#allocation3], 1
    %s3324 = scalar_lea.sflag [#allocation3], 1
    %3325 = vsyncpa %s3324, 1

</llo_original>
